<compile_context>
chip_gen: v5e
topology: v5e:2x2
jax: 0.10.0
libtpu: 0.0.40
codegen_flags: <defaults>
</compile_context>

<pallas_src>
import functools

import jax
import jax.numpy as jnp
from jax.experimental import pallas as pl
from jax.experimental.pallas import tpu as pltpu

_NEG_INF = -1e30


def _round_up(v, m):
  return ((v + m - 1) // m) * m


# ---------------------------------------------------------------------------
# Kernels
# ---------------------------------------------------------------------------
def _gat_project_kernel(x_ref, w_ref, asrc_w_ref, adst_w_ref,
                        h_ref, asrc_ref, adst_ref):
  """Per-layer projection, row-tiled over nodes (runs once per layer).

  x_ref      : [tm, F_in]    f32   node features (this row tile)
  w_ref      : [F_in, F_out] bf16
  asrc_w_ref : [1, F_out]    f32   attention vector (source half)
  adst_w_ref : [1, F_out]    f32   attention vector (destination half)
  h_ref      : [tm, F_out]   bf16  projected features (out)
  asrc_ref   : [tm, 1]       f32   per-node source logit (out)
  adst_ref   : [tm, 1]       f32   per-node destination logit (out)
  """
  h = jnp.dot(x_ref[...].astype(jnp.bfloat16), w_ref[...],
              preferred_element_type=jnp.float32)              # [tm, F_out] f32
  h_ref[...] = h.astype(jnp.bfloat16)
  asrc_ref[...] = jnp.sum(h * asrc_w_ref[...], axis=-1, keepdims=True)
  adst_ref[...] = jnp.sum(h * adst_w_ref[...], axis=-1, keepdims=True)


def _gat_attn_kernel(h_ref, asrc_ref, adst_ref, bias_ref, adj_ref, out_ref,
                     *, apply_elu: bool):
  """Masked-softmax attention + aggregation for one destination-row tile.

  h_ref    : [N, F_out]  bf16  all projected node features (resident)
  asrc_ref : [1, N]      f32   source logits for every node
  adst_ref : [tm, 1]     f32   destination logits for this tile
  bias_ref : [1, F_out]  f32
  adj_ref  : [tm, N]     bf16  additive edge mask: 0.0 edge / -1e30 no edge
  out_ref  : [tm, F_out] f32
  """
  # e[i, j] = LeakyReLU(alpha_dst[i] + alpha_src[j], 0.2) + additive edge mask
  e = adst_ref[...] + asrc_ref[...]                            # [tm, N] bcast
  e = jnp.maximum(e, 0.2 * e)                                  # LeakyReLU(0.2)
  e = e + adj_ref[...].astype(jnp.float32)                     # masked -> ~-1e30

  # Softmax over source nodes j (self-loops keep every row non-empty).
  m = jnp.max(e, axis=-1, keepdims=True)                       # [tm, 1]
  p = jnp.exp(e - m)                                           # [tm, N] f32
  denom = jnp.sum(p, axis=-1, keepdims=True)                   # [tm, 1]

  # Aggregate first, normalize the small [tm, F_out] result afterwards.
  out = jnp.dot(p.astype(jnp.bfloat16), h_ref[...],
                preferred_element_type=jnp.float32)            # [tm, F_out]
  out = out * pl.reciprocal(denom, approx=True) + bias_ref[...]
  if apply_elu:
    out = jnp.where(out > 0, out, jnp.exp(out) - 1.0)          # ELU(alpha=1)
  out_ref[...] = out.astype(out_ref.dtype)


# ---------------------------------------------------------------------------
# VMEM budgeting / tile selection
# ---------------------------------------------------------------------------
def _attn_vmem_bytes(tm, n_pad, f_out):
  return (2 * tm * n_pad * 2          # adj tile, bf16, double-buffered
          + 2 * n_pad * f_out * 2     # h (constant block, conservative x2)
          + 4 * tm * n_pad * 4        # e / p f32 intermediates + headroom
          + 2 * tm * f_out * 4        # out tile, double-buffered
          + n_pad * 4 + 4 * tm + 8 * f_out
          + (1 << 20))                # slack


def _proj_vmem_bytes(tm, f_in, f_out):
  return (2 * tm * f_in * 4 + 2 * f_in * f_out * 2 + 2 * tm * f_out * 2
          + tm * f_out * 4 + 8 * tm + 8 * f_out + (1 << 20))


def _pick_tm(n_pad, f_out, block_rows):
  """Largest pow2 multiple of 128 dividing n_pad that fits the VMEM budget."""
  tm, t = 128, 256
  budget = 40 * (1 << 20)             # keep working set v7x-friendly
  while (t <= min(block_rows, n_pad) and n_pad % t == 0
         and _attn_vmem_bytes(t, n_pad, f_out) <= budget):
    tm, t = t, t * 2
  return tm


# ---------------------------------------------------------------------------
# pallas_call wrappers
# ---------------------------------------------------------------------------
def gat_project(x, w, a_src, a_dst, *, tm):
  """h = x @ W (bf16), alpha_src / alpha_dst per node. One call per layer."""
  n_pad, f_in = x.shape
  f_out = w.shape[1]
  grid = (n_pad // tm,)
  vmem = int(min(max(_proj_vmem_bytes(tm, f_in, f_out), 16 << 20), 64 << 20))
  return pl.pallas_call(
      _gat_project_kernel,
      out_shape=(jax.ShapeDtypeStruct((n_pad, f_out), jnp.bfloat16),
                 jax.ShapeDtypeStruct((n_pad, 1), jnp.float32),
                 jax.ShapeDtypeStruct((n_pad, 1), jnp.float32)),
      grid=grid,
      in_specs=[
          pl.BlockSpec((tm, f_in), lambda i: (i, 0)),      # x row tile
          pl.BlockSpec((f_in, f_out), lambda i: (0, 0)),   # W (bf16)
          pl.BlockSpec((1, f_out), lambda i: (0, 0)),      # a_src
          pl.BlockSpec((1, f_out), lambda i: (0, 0)),      # a_dst
      ],
      out_specs=[
          pl.BlockSpec((tm, f_out), lambda i: (i, 0)),     # h
          pl.BlockSpec((tm, 1), lambda i: (i, 0)),         # alpha_src col
          pl.BlockSpec((tm, 1), lambda i: (i, 0)),         # alpha_dst col
      ],
      compiler_params=pltpu.CompilerParams(
          dimension_semantics=("parallel",), vmem_limit_bytes=vmem),
  )(x, w, a_src, a_dst)


def gat_attention(h, asrc_row, adst_col, bias, adj, *, apply_elu, tm):
  """Row-tiled masked-softmax attention + aggregation. One call per layer."""
  n_pad, f_out = h.shape
  grid = (n_pad // tm,)
  vmem = int(min(max(_attn_vmem_bytes(tm, n_pad, f_out), 16 << 20), 64 << 20))
  kernel = functools.partial(_gat_attn_kernel, apply_elu=apply_elu)
  return pl.pallas_call(
      kernel,
      out_shape=jax.ShapeDtypeStruct((n_pad, f_out), jnp.float32),
      grid=grid,
      in_specs=[
          pl.BlockSpec((n_pad, f_out), lambda i: (0, 0)),  # h (all nodes, bf16)
          pl.BlockSpec((1, n_pad), lambda i: (0, 0)),      # alpha_src row
          pl.BlockSpec((tm, 1), lambda i: (i, 0)),         # alpha_dst column
          pl.BlockSpec((1, f_out), lambda i: (0, 0)),      # bias
          pl.BlockSpec((tm, n_pad), lambda i: (i, 0)),     # additive edge mask
      ],
      out_specs=pl.BlockSpec((tm, f_out), lambda i: (i, 0)),
      compiler_params=pltpu.CompilerParams(
          dimension_semantics=("parallel",), vmem_limit_bytes=vmem),
  )(h, asrc_row, adst_col, bias, adj)


# ---------------------------------------------------------------------------
# Whole forward (jitted)
# ---------------------------------------------------------------------------
def gat_forward(params, x, edge_index, *, dim_out, block_rows):
  n, f_in = x.shape
  f_in_pad = params[0][0].shape[0]
  f_out_max = max(p[0].shape[1] for p in params)
  n_pad = _round_up(n, 128)
  tm = _pick_tm(n_pad, f_out_max, block_rows)

  # Additive adjacency mask adj[dst, src]: 0.0 where an edge exists (plus
  # self-loops, matching PyG add_self_loops), -1e30 elsewhere.  Built directly
  # in bf16 (halves the dominant N^2 HBM stream; -1e30 is representable).
  adj = jnp.full((n_pad, n_pad), _NEG_INF, jnp.bfloat16)
  adj = adj.at[edge_index[1], edge_index[0]].set(0.0)
  diag = jnp.arange(n_pad)
  adj = adj.at[diag, diag].set(0.0)

  z = jnp.zeros((n_pad, f_in_pad), jnp.float32).at[:n, :f_in].set(x)
  n_layers = len(params)
  for li, (w, a_src, a_dst, bias) in enumerate(params):
    h, asrc_col, adst_col = gat_project(z, w, a_src, a_dst, tm=tm)
    z = gat_attention(h, asrc_col.reshape(1, n_pad), adst_col, bias, adj,
                      apply_elu=(li < n_layers - 1), tm=tm)
    # F.dropout(z, p, training=False) -> identity (eval mode)
  return z[:n, :dim_out]


_gat_forward_jit = jax.jit(gat_forward,
                           static_argnames=("dim_out", "block_rows"))


# ---------------------------------------------------------------------------
# Module mirror
# ---------------------------------------------------------------------------
def _glorot(key, shape):
  fan_in, fan_out = shape[-2], shape[-1]
  limit = jnp.sqrt(6.0 / (fan_in + fan_out))
  return jax.random.uniform(key, shape, jnp.float32, -limit, limit)


class GATPallas:
  """Mirror of the PyTorch GAT module (EdgePredictor=False path, eval mode)."""

  def __init__(self, key, dim_in, dim_out, hidden_dim, layer_num, dropout):
    self.dropout_rate = dropout
    dims = [dim_in] + [hidden_dim] * (layer_num - 1) + [dim_out]
    self.dims = dims
    params = []
    for i in range(len(dims) - 1):
      f_in, f_out = dims[i], dims[i + 1]
      f_in_pad, f_out_pad = _round_up(f_in, 128), _round_up(f_out, 128)
      key, kw, ks, kd = jax.random.split(key, 4)
      w = _glorot(kw, (f_in, f_out))
      a_src = _glorot(ks, (1, f_out))
      a_dst = _glorot(kd, (1, f_out))
      # Zero-pad every feature dim to a multiple of 128 lanes (pads are inert).
      # W is stored pre-cast to bf16 (pure MXU operand); attention vectors and
      # bias stay f32.
      w_p = (jnp.zeros((f_in_pad, f_out_pad), jnp.float32)
             .at[:f_in, :f_out].set(w).astype(jnp.bfloat16))
      a_src_p = jnp.zeros((1, f_out_pad), jnp.float32).at[:, :f_out].set(a_src)
      a_dst_p = jnp.zeros((1, f_out_pad), jnp.float32).at[:, :f_out].set(a_dst)
      bias_p = jnp.zeros((1, f_out_pad), jnp.float32)
      params.append((w_p, a_src_p, a_dst_p, bias_p))
    self.params = tuple(params)

  def __call__(self, x, edge_index, *, block_rows=256):
    return _gat_forward_jit(self.params, x, edge_index,
                            dim_out=self.dims[-1], block_rows=block_rows)


if __name__ == "__main__":
  key = jax.random.PRNGKey(0)
  k_x, k_e, k_p = jax.random.split(key, 3)

  N, E = 64, 256
  DIM_IN, HIDDEN, DIM_OUT, LAYER_NUM = 16, 32, 8, 2

  x = jax.random.normal(k_x, (N, DIM_IN), jnp.float32)
  edge_index = jax.random.randint(k_e, (2, E), 0, N, jnp.int32)

  model = GATPallas(k_p, DIM_IN, DIM_OUT, HIDDEN, LAYER_NUM, dropout=0.5)
  out = model(x, edge_index)
  out = jax.block_until_ready(out)
  assert out.shape == (N, DIM_OUT) and bool(jnp.all(jnp.isfinite(out)))
  print("KERNEL_OK")
</pallas_src>

<mosaic_0001>
module attributes {stable_mosaic.version = 11 : i64} {
  func.func @_gat_project_kernel(%arg0: i32, %arg1: memref<128x128xf32, #tpu.memory_space<vmem>>, %arg2: memref<128x128xbf16, #tpu.memory_space<vmem>>, %arg3: memref<1x128xf32, #tpu.memory_space<vmem>>, %arg4: memref<1x128xf32, #tpu.memory_space<vmem>>, %arg5: memref<128x128xbf16, #tpu.memory_space<vmem>>, %arg6: memref<128x1xf32, #tpu.memory_space<vmem>>, %arg7: memref<128x1xf32, #tpu.memory_space<vmem>>) attributes {dimension_semantics = [#tpu.dimension_semantics<parallel>], iteration_bounds = array<i64: 1>, scalar_prefetch = 0 : i64, scratch_operands = 0 : i64, tpu.core_type = #tpu.core_type<tc>, window_params = [{transform_indices = @transform_0, window_bounds = array<i64: 128, 128>}, {pipeline_mode = #tpu.pipeline_mode<synchronous>, transform_indices = @transform_1, window_bounds = array<i64: 128, 128>}, {pipeline_mode = #tpu.pipeline_mode<synchronous>, transform_indices = @transform_2, window_bounds = array<i64: 1, 128>}, {pipeline_mode = #tpu.pipeline_mode<synchronous>, transform_indices = @transform_3, window_bounds = array<i64: 1, 128>}, {transform_indices = @transform_4, window_bounds = array<i64: 128, 128>}, {transform_indices = @transform_5, window_bounds = array<i64: 128, 1>}, {transform_indices = @transform_6, window_bounds = array<i64: 128, 1>}]} {
    %c0 = arith.constant 0 : index
    %c0_0 = arith.constant 0 : index
    %0 = vector.load %arg1[%c0, %c0_0] : memref<128x128xf32, #tpu.memory_space<vmem>>, vector<128x128xf32>
    %1 = arith.truncf %0 : vector<128x128xf32> to vector<128x128xbf16>
    %c0_1 = arith.constant 0 : index
    %c0_2 = arith.constant 0 : index
    %2 = vector.load %arg2[%c0_1, %c0_2] : memref<128x128xbf16, #tpu.memory_space<vmem>>, vector<128x128xbf16>
    %cst = arith.constant dense<0.000000e+00> : vector<128x128xf32>
    %3 = tpu.matmul %1, %2, %cst {dimension_numbers = #tpu.dot_dimension_numbers<[1], [0], [0], [1], [0, 0, 1, 1], [], []>} : vector<128x128xbf16>, vector<128x128xbf16>, vector<128x128xf32> -> vector<128x128xf32>
    %4 = arith.truncf %3 : vector<128x128xf32> to vector<128x128xbf16>
    %c0_3 = arith.constant 0 : index
    %c0_4 = arith.constant 0 : index
    %5 = vector.load %arg5[%c0_3, %c0_4] : memref<128x128xbf16, #tpu.memory_space<vmem>>, vector<128x128xbf16>
    tpu.vector_store %arg5[%c0_3, %c0_4], %4 {strides = array<i32>} : memref<128x128xbf16, #tpu.memory_space<vmem>>, vector<128x128xbf16>,
    %c0_5 = arith.constant 0 : index
    %c0_6 = arith.constant 0 : index
    %6 = vector.load %arg3[%c0_5, %c0_6] : memref<1x128xf32, #tpu.memory_space<vmem>>, vector<1x128xf32>
    %7 = vector.broadcast %6 : vector<1x128xf32> to vector<128x128xf32>
    %8 = arith.mulf %3, %7 : vector<128x128xf32>
    %cst_7 = arith.constant dense<0.000000e+00> : vector<128xf32>
    %9 = vector.multi_reduction <add>, %8, %cst_7 [1] : vector<128x128xf32> to vector<128xf32>
    %10 = vector.shape_cast %9 : vector<128xf32> to vector<128x1xf32>
    %c0_8 = arith.constant 0 : index
    %c0_9 = arith.constant 0 : index
    %11 = vector.load %arg6[%c0_8, %c0_9] : memref<128x1xf32, #tpu.memory_space<vmem>>, vector<128x1xf32>
    tpu.vector_store %arg6[%c0_8, %c0_9], %10 {strides = array<i32>} : memref<128x1xf32, #tpu.memory_space<vmem>>, vector<128x1xf32>,
    %c0_10 = arith.constant 0 : index
    %c0_11 = arith.constant 0 : index
    %12 = vector.load %arg4[%c0_10, %c0_11] : memref<1x128xf32, #tpu.memory_space<vmem>>, vector<1x128xf32>
    %13 = vector.broadcast %12 : vector<1x128xf32> to vector<128x128xf32>
    %14 = arith.mulf %3, %13 : vector<128x128xf32>
    %cst_12 = arith.constant dense<0.000000e+00> : vector<128xf32>
    %15 = vector.multi_reduction <add>, %14, %cst_12 [1] : vector<128x128xf32> to vector<128xf32>
    %16 = vector.shape_cast %15 : vector<128xf32> to vector<128x1xf32>
    %c0_13 = arith.constant 0 : index
    %c0_14 = arith.constant 0 : index
    %17 = vector.load %arg7[%c0_13, %c0_14] : memref<128x1xf32, #tpu.memory_space<vmem>>, vector<128x1xf32>
    tpu.vector_store %arg7[%c0_13, %c0_14], %16 {strides = array<i32>} : memref<128x1xf32, #tpu.memory_space<vmem>>, vector<128x1xf32>,
    return
  }
  func.func @transform_0(%arg0: i32) -> (i32, i32) {
    %c0_i32 = arith.constant 0 : i32
    %c0_i32_0 = arith.constant 0 : i32
    return %arg0, %c0_i32 : i32, i32
  }
  func.func @transform_1(%arg0: i32) -> (i32, i32) {
    %c0_i32 = arith.constant 0 : i32
    %c0_i32_0 = arith.constant 0 : i32
    %c0_i32_1 = arith.constant 0 : i32
    return %c0_i32, %c0_i32_0 : i32, i32
  }
  func.func @transform_2(%arg0: i32) -> (i32, i32) {
    %c0_i32 = arith.constant 0 : i32
    %c0_i32_0 = arith.constant 0 : i32
    %c0_i32_1 = arith.constant 0 : i32
    return %c0_i32, %c0_i32_0 : i32, i32
  }
  func.func @transform_3(%arg0: i32) -> (i32, i32) {
    %c0_i32 = arith.constant 0 : i32
    %c0_i32_0 = arith.constant 0 : i32
    %c0_i32_1 = arith.constant 0 : i32
    return %c0_i32, %c0_i32_0 : i32, i32
  }
  func.func @transform_4(%arg0: i32) -> (i32, i32) {
    %c0_i32 = arith.constant 0 : i32
    %c0_i32_0 = arith.constant 0 : i32
    return %arg0, %c0_i32 : i32, i32
  }
  func.func @transform_5(%arg0: i32) -> (i32, i32) {
    %c0_i32 = arith.constant 0 : i32
    %c0_i32_0 = arith.constant 0 : i32
    return %arg0, %c0_i32 : i32, i32
  }
  func.func @transform_6(%arg0: i32) -> (i32, i32) {
    %c0_i32 = arith.constant 0 : i32
    %c0_i32_0 = arith.constant 0 : i32
    return %arg0, %c0_i32 : i32, i32
  }
}

module attributes {stable_mosaic.version = 11 : i64} {
  func.func @_gat_attn_kernel(%arg0: i32, %arg1: memref<128x128xbf16, #tpu.memory_space<vmem>>, %arg2: memref<1x128xf32, #tpu.memory_space<vmem>>, %arg3: memref<128x1xf32, #tpu.memory_space<vmem>>, %arg4: memref<1x128xf32, #tpu.memory_space<vmem>>, %arg5: memref<128x128xbf16, #tpu.memory_space<vmem>>, %arg6: memref<128x128xf32, #tpu.memory_space<vmem>>) attributes {dimension_semantics = [#tpu.dimension_semantics<parallel>], iteration_bounds = array<i64: 1>, scalar_prefetch = 0 : i64, scratch_operands = 0 : i64, tpu.core_type = #tpu.core_type<tc>, window_params = [{pipeline_mode = #tpu.pipeline_mode<synchronous>, transform_indices = @transform_0, window_bounds = array<i64: 128, 128>}, {pipeline_mode = #tpu.pipeline_mode<synchronous>, transform_indices = @transform_1, window_bounds = array<i64: 1, 128>}, {transform_indices = @transform_2, window_bounds = array<i64: 128, 1>}, {pipeline_mode = #tpu.pipeline_mode<synchronous>, transform_indices = @transform_3, window_bounds = array<i64: 1, 128>}, {transform_indices = @transform_4, window_bounds = array<i64: 128, 128>}, {transform_indices = @transform_5, window_bounds = array<i64: 128, 128>}]} {
    %c0 = arith.constant 0 : index
    %c0_0 = arith.constant 0 : index
    %0 = vector.load %arg3[%c0, %c0_0] : memref<128x1xf32, #tpu.memory_space<vmem>>, vector<128x1xf32>
    %c0_1 = arith.constant 0 : index
    %c0_2 = arith.constant 0 : index
    %1 = vector.load %arg2[%c0_1, %c0_2] : memref<1x128xf32, #tpu.memory_space<vmem>>, vector<1x128xf32>
    %2 = vector.broadcast %0 : vector<128x1xf32> to vector<128x128xf32>
    %3 = vector.broadcast %1 : vector<1x128xf32> to vector<128x128xf32>
    %4 = arith.addf %2, %3 : vector<128x128xf32>
    %cst = arith.constant 2.000000e-01 : f32
    %5 = vector.broadcast %cst : f32 to vector<128x128xf32>
    %6 = arith.mulf %5, %4 : vector<128x128xf32>
    %7 = arith.maximumf %4, %6 : vector<128x128xf32>
    %c0_3 = arith.constant 0 : index
    %c0_4 = arith.constant 0 : index
    %8 = vector.load %arg5[%c0_3, %c0_4] : memref<128x128xbf16, #tpu.memory_space<vmem>>, vector<128x128xbf16>
    %9 = arith.extf %8 : vector<128x128xbf16> to vector<128x128xf32>
    %10 = arith.addf %7, %9 : vector<128x128xf32>
    %cst_5 = arith.constant dense<0xFF800000> : vector<128xf32>
    %11 = vector.multi_reduction <maximumf>, %10, %cst_5 [1] : vector<128x128xf32> to vector<128xf32>
    %12 = vector.shape_cast %11 : vector<128xf32> to vector<128x1xf32>
    %13 = vector.broadcast %12 : vector<128x1xf32> to vector<128x128xf32>
    %14 = arith.subf %10, %13 : vector<128x128xf32>
    %15 = math.exp %14 : vector<128x128xf32>
    %cst_6 = arith.constant dense<0.000000e+00> : vector<128xf32>
    %16 = vector.multi_reduction <add>, %15, %cst_6 [1] : vector<128x128xf32> to vector<128xf32>
    %17 = vector.shape_cast %16 : vector<128xf32> to vector<128x1xf32>
    %18 = arith.truncf %15 : vector<128x128xf32> to vector<128x128xbf16>
    %c0_7 = arith.constant 0 : index
    %c0_8 = arith.constant 0 : index
    %19 = vector.load %arg1[%c0_7, %c0_8] : memref<128x128xbf16, #tpu.memory_space<vmem>>, vector<128x128xbf16>
    %cst_9 = arith.constant dense<0.000000e+00> : vector<128x128xf32>
    %20 = tpu.matmul %18, %19, %cst_9 {dimension_numbers = #tpu.dot_dimension_numbers<[1], [0], [0], [1], [0, 0, 1, 1], [], []>} : vector<128x128xbf16>, vector<128x128xbf16>, vector<128x128xf32> -> vector<128x128xf32>
    %21 = tpu.reciprocal %17 {approx = true} : vector<128x1xf32> -> vector<128x1xf32>
    %22 = vector.broadcast %21 : vector<128x1xf32> to vector<128x128xf32>
    %23 = arith.mulf %20, %22 : vector<128x128xf32>
    %c0_10 = arith.constant 0 : index
    %c0_11 = arith.constant 0 : index
    %24 = vector.load %arg4[%c0_10, %c0_11] : memref<1x128xf32, #tpu.memory_space<vmem>>, vector<1x128xf32>
    %25 = vector.broadcast %24 : vector<1x128xf32> to vector<128x128xf32>
    %26 = arith.addf %23, %25 : vector<128x128xf32>
    %cst_12 = arith.constant 0.000000e+00 : f32
    %27 = vector.broadcast %cst_12 : f32 to vector<128x128xf32>
    %28 = arith.cmpf ogt, %26, %27 : vector<128x128xf32>
    %29 = math.exp %26 : vector<128x128xf32>
    %cst_13 = arith.constant 1.000000e+00 : f32
    %30 = vector.broadcast %cst_13 : f32 to vector<128x128xf32>
    %31 = arith.subf %29, %30 : vector<128x128xf32>
    %32 = arith.select %28, %26, %31 : vector<128x128xi1>, vector<128x128xf32>
    %c0_14 = arith.constant 0 : index
    %c0_15 = arith.constant 0 : index
    %33 = vector.load %arg6[%c0_14, %c0_15] : memref<128x128xf32, #tpu.memory_space<vmem>>, vector<128x128xf32>
    tpu.vector_store %arg6[%c0_14, %c0_15], %32 {strides = array<i32>} : memref<128x128xf32, #tpu.memory_space<vmem>>, vector<128x128xf32>,
    return
  }
  func.func @transform_0(%arg0: i32) -> (i32, i32) {
    %c0_i32 = arith.constant 0 : i32
    %c0_i32_0 = arith.constant 0 : i32
    %c0_i32_1 = arith.constant 0 : i32
    return %c0_i32, %c0_i32_0 : i32, i32
  }
  func.func @transform_1(%arg0: i32) -> (i32, i32) {
    %c0_i32 = arith.constant 0 : i32
    %c0_i32_0 = arith.constant 0 : i32
    %c0_i32_1 = arith.constant 0 : i32
    return %c0_i32, %c0_i32_0 : i32, i32
  }
  func.func @transform_2(%arg0: i32) -> (i32, i32) {
    %c0_i32 = arith.constant 0 : i32
    %c0_i32_0 = arith.constant 0 : i32
    return %arg0, %c0_i32 : i32, i32
  }
  func.func @transform_3(%arg0: i32) -> (i32, i32) {
    %c0_i32 = arith.constant 0 : i32
    %c0_i32_0 = arith.constant 0 : i32
    %c0_i32_1 = arith.constant 0 : i32
    return %c0_i32, %c0_i32_0 : i32, i32
  }
  func.func @transform_4(%arg0: i32) -> (i32, i32) {
    %c0_i32 = arith.constant 0 : i32
    %c0_i32_0 = arith.constant 0 : i32
    return %arg0, %c0_i32 : i32, i32
  }
  func.func @transform_5(%arg0: i32) -> (i32, i32) {
    %c0_i32 = arith.constant 0 : i32
    %c0_i32_0 = arith.constant 0 : i32
    return %arg0, %c0_i32 : i32, i32
  }
}

module attributes {stable_mosaic.version = 11 : i64} {
  func.func @_gat_attn_kernel(%arg0: i32, %arg1: memref<128x128xbf16, #tpu.memory_space<vmem>>, %arg2: memref<1x128xf32, #tpu.memory_space<vmem>>, %arg3: memref<128x1xf32, #tpu.memory_space<vmem>>, %arg4: memref<1x128xf32, #tpu.memory_space<vmem>>, %arg5: memref<128x128xbf16, #tpu.memory_space<vmem>>, %arg6: memref<128x128xf32, #tpu.memory_space<vmem>>) attributes {dimension_semantics = [#tpu.dimension_semantics<parallel>], iteration_bounds = array<i64: 1>, scalar_prefetch = 0 : i64, scratch_operands = 0 : i64, tpu.core_type = #tpu.core_type<tc>, window_params = [{pipeline_mode = #tpu.pipeline_mode<synchronous>, transform_indices = @transform_0, window_bounds = array<i64: 128, 128>}, {pipeline_mode = #tpu.pipeline_mode<synchronous>, transform_indices = @transform_1, window_bounds = array<i64: 1, 128>}, {transform_indices = @transform_2, window_bounds = array<i64: 128, 1>}, {pipeline_mode = #tpu.pipeline_mode<synchronous>, transform_indices = @transform_3, window_bounds = array<i64: 1, 128>}, {transform_indices = @transform_4, window_bounds = array<i64: 128, 128>}, {transform_indices = @transform_5, window_bounds = array<i64: 128, 128>}]} {
    %c0 = arith.constant 0 : index
    %c0_0 = arith.constant 0 : index
    %0 = vector.load %arg3[%c0, %c0_0] : memref<128x1xf32, #tpu.memory_space<vmem>>, vector<128x1xf32>
    %c0_1 = arith.constant 0 : index
    %c0_2 = arith.constant 0 : index
    %1 = vector.load %arg2[%c0_1, %c0_2] : memref<1x128xf32, #tpu.memory_space<vmem>>, vector<1x128xf32>
    %2 = vector.broadcast %0 : vector<128x1xf32> to vector<128x128xf32>
    %3 = vector.broadcast %1 : vector<1x128xf32> to vector<128x128xf32>
    %4 = arith.addf %2, %3 : vector<128x128xf32>
    %cst = arith.constant 2.000000e-01 : f32
    %5 = vector.broadcast %cst : f32 to vector<128x128xf32>
    %6 = arith.mulf %5, %4 : vector<128x128xf32>
    %7 = arith.maximumf %4, %6 : vector<128x128xf32>
    %c0_3 = arith.constant 0 : index
    %c0_4 = arith.constant 0 : index
    %8 = vector.load %arg5[%c0_3, %c0_4] : memref<128x128xbf16, #tpu.memory_space<vmem>>, vector<128x128xbf16>
    %9 = arith.extf %8 : vector<128x128xbf16> to vector<128x128xf32>
    %10 = arith.addf %7, %9 : vector<128x128xf32>
    %cst_5 = arith.constant dense<0xFF800000> : vector<128xf32>
    %11 = vector.multi_reduction <maximumf>, %10, %cst_5 [1] : vector<128x128xf32> to vector<128xf32>
    %12 = vector.shape_cast %11 : vector<128xf32> to vector<128x1xf32>
    %13 = vector.broadcast %12 : vector<128x1xf32> to vector<128x128xf32>
    %14 = arith.subf %10, %13 : vector<128x128xf32>
    %15 = math.exp %14 : vector<128x128xf32>
    %cst_6 = arith.constant dense<0.000000e+00> : vector<128xf32>
    %16 = vector.multi_reduction <add>, %15, %cst_6 [1] : vector<128x128xf32> to vector<128xf32>
    %17 = vector.shape_cast %16 : vector<128xf32> to vector<128x1xf32>
    %18 = arith.truncf %15 : vector<128x128xf32> to vector<128x128xbf16>
    %c0_7 = arith.constant 0 : index
    %c0_8 = arith.constant 0 : index
    %19 = vector.load %arg1[%c0_7, %c0_8] : memref<128x128xbf16, #tpu.memory_space<vmem>>, vector<128x128xbf16>
    %cst_9 = arith.constant dense<0.000000e+00> : vector<128x128xf32>
    %20 = tpu.matmul %18, %19, %cst_9 {dimension_numbers = #tpu.dot_dimension_numbers<[1], [0], [0], [1], [0, 0, 1, 1], [], []>} : vector<128x128xbf16>, vector<128x128xbf16>, vector<128x128xf32> -> vector<128x128xf32>
    %21 = tpu.reciprocal %17 {approx = true} : vector<128x1xf32> -> vector<128x1xf32>
    %22 = vector.broadcast %21 : vector<128x1xf32> to vector<128x128xf32>
    %23 = arith.mulf %20, %22 : vector<128x128xf32>
    %c0_10 = arith.constant 0 : index
    %c0_11 = arith.constant 0 : index
    %24 = vector.load %arg4[%c0_10, %c0_11] : memref<1x128xf32, #tpu.memory_space<vmem>>, vector<1x128xf32>
    %25 = vector.broadcast %24 : vector<1x128xf32> to vector<128x128xf32>
    %26 = arith.addf %23, %25 : vector<128x128xf32>
    %c0_12 = arith.constant 0 : index
    %c0_13 = arith.constant 0 : index
    %27 = vector.load %arg6[%c0_12, %c0_13] : memref<128x128xf32, #tpu.memory_space<vmem>>, vector<128x128xf32>
    tpu.vector_store %arg6[%c0_12, %c0_13], %26 {strides = array<i32>} : memref<128x128xf32, #tpu.memory_space<vmem>>, vector<128x128xf32>,
    return
  }
  func.func @transform_0(%arg0: i32) -> (i32, i32) {
    %c0_i32 = arith.constant 0 : i32
    %c0_i32_0 = arith.constant 0 : i32
    %c0_i32_1 = arith.constant 0 : i32
    return %c0_i32, %c0_i32_0 : i32, i32
  }
  func.func @transform_1(%arg0: i32) -> (i32, i32) {
    %c0_i32 = arith.constant 0 : i32
    %c0_i32_0 = arith.constant 0 : i32
    %c0_i32_1 = arith.constant 0 : i32
    return %c0_i32, %c0_i32_0 : i32, i32
  }
  func.func @transform_2(%arg0: i32) -> (i32, i32) {
    %c0_i32 = arith.constant 0 : i32
    %c0_i32_0 = arith.constant 0 : i32
    return %arg0, %c0_i32 : i32, i32
  }
  func.func @transform_3(%arg0: i32) -> (i32, i32) {
    %c0_i32 = arith.constant 0 : i32
    %c0_i32_0 = arith.constant 0 : i32
    %c0_i32_1 = arith.constant 0 : i32
    return %c0_i32, %c0_i32_0 : i32, i32
  }
  func.func @transform_4(%arg0: i32) -> (i32, i32) {
    %c0_i32 = arith.constant 0 : i32
    %c0_i32_0 = arith.constant 0 : i32
    return %arg0, %c0_i32 : i32, i32
  }
  func.func @transform_5(%arg0: i32) -> (i32, i32) {
    %c0_i32 = arith.constant 0 : i32
    %c0_i32_0 = arith.constant 0 : i32
    return %arg0, %c0_i32 : i32, i32
  }
}

</mosaic_0001>

<llo_original>
// kernel: gat_forward.4
$region0: #{gat_forward.4}
  #allocation0 [shape = 'u32[]', space=smem, size = 0x4, offset = 0x4, fixed_abs, tag = 'smem constant byte address 0x4 - core index']
  #allocation1 [shape = 'u32[72,128]{1,0:T(1,128)}', space=vmem, size = 0x9000, scoped, tag = 'internal scratch']
  %s0 = inlined_call_operand.vmem [shape: f32[128,128], index: 0, kind: input, shape index: {}]
  %s1 = inlined_call_operand.vmem [shape: bf16[128,128], index: 1, kind: input, shape index: {}]
  %s2 = inlined_call_operand.vmem [shape: f32[1,128], index: 2, kind: input, shape index: {}]
  %s3 = inlined_call_operand.vmem [shape: f32[1,128], index: 3, kind: input, shape index: {}]
  %s4 = inlined_call_operand.vmem [shape: bf16[128,128], index: 4, kind: output, shape index: {0}]
  %s5 = inlined_call_operand.vmem [shape: f32[128,1], index: 5, kind: output, shape index: {1}]
  %s6 = inlined_call_operand.vmem [shape: f32[128,1], index: 6, kind: output, shape index: {2}]
  %7 = xla_tuple %s4, %s5, %s6
  %s8 = sld [smem:[#allocation0]]
  $region42: #{gat_forward.4} parent=0
    _
  %s10 = ssub.s32 1, %s8
  %s11 = scalar_select 0, %s10, %s8
  // Predicated region
  $region2: #{gat_forward.4} parent=0 // pred_check
    _
  $region3: #{gat_forward.4} parent=0 // pred_check_branch
    %13 = sbr.rel (0) target = $region5
  $region4: #{gat_forward.4} parent=0 // pred_region
    _
  $region5: #{gat_forward.4} parent=0 // pred_fallthru
    _
  // Predicated region
  $region6: #{gat_forward.4} parent=0 // pred_check
    _
  $region7: #{gat_forward.4} parent=0 // pred_check_branch
    %15 = sbr.rel (0) target = $region9
  $region8: #{gat_forward.4} parent=0 // pred_region
    _
  $region9: #{gat_forward.4} parent=0 // pred_fallthru
    _
  // Predicated region
  $region10: #{gat_forward.4} parent=0 // pred_check
    _
  $region11: #{gat_forward.4} parent=0 // pred_check_branch
    %17 = sbr.rel (0) target = $region13
  $region12: #{gat_forward.4} parent=0 // pred_region
    _
  $region13: #{gat_forward.4} parent=0 // pred_fallthru
    _
  // Predicated region
  $region14: #{gat_forward.4} parent=0 // pred_check
    _
  $region15: #{gat_forward.4} parent=0 // pred_check_branch
    %19 = sbr.rel (0) target = $region17
  $region16: #{gat_forward.4} parent=0 // pred_region
    _
  $region17: #{gat_forward.4} parent=0 // pred_fallthru
    _
  %v20 = vld [vmem:[%s0] sm:$0xff]
  %v21 = vld [vmem:[%s0 + $0x8] sm:$0xff]
  %v22 = vld [vmem:[%s0 + $0x10] sm:$0xff]
  %v23 = vld [vmem:[%s0 + $0x18] sm:$0xff]
  %v24 = vld [vmem:[%s0 + $0x20] sm:$0xff]
  %v25 = vld [vmem:[%s0 + $0x28] sm:$0xff]
  %v26 = vld [vmem:[%s0 + $0x30] sm:$0xff]
  %v27 = vld [vmem:[%s0 + $0x38] sm:$0xff]
  %v28 = vld [vmem:[%s0 + $0x40] sm:$0xff]
  %v29 = vld [vmem:[%s0 + $0x48] sm:$0xff]
  %v30 = vld [vmem:[%s0 + $0x50] sm:$0xff]
  %v31 = vld [vmem:[%s0 + $0x58] sm:$0xff]
  %v32 = vld [vmem:[%s0 + $0x60] sm:$0xff]
  %v33 = vld [vmem:[%s0 + $0x68] sm:$0xff]
  %v34 = vld [vmem:[%s0 + $0x70] sm:$0xff]
  %v35 = vld [vmem:[%s0 + $0x78] sm:$0xff]
  %v36 = vpack.c.bf16 %v21, %v20
  %v37 = vpack.c.bf16 %v23, %v22
  %v38 = vpack.c.bf16 %v25, %v24
  %v39 = vpack.c.bf16 %v27, %v26
  %v40 = vpack.c.bf16 %v29, %v28
  %v41 = vpack.c.bf16 %v31, %v30
  %v42 = vpack.c.bf16 %v33, %v32
  %v43 = vpack.c.bf16 %v35, %v34
  %v44 = vld [vmem:[%s1] sm:$0xf]
  %v45 = vld [vmem:[%s1 + $0x4] sm:$0xf]
  %v46 = vld [vmem:[%s1 + $0x8] sm:$0xf]
  %v47 = vld [vmem:[%s1 + $0xc] sm:$0xf]
  %v48 = vld [vmem:[%s1 + $0x10] sm:$0xf]
  %v49 = vld [vmem:[%s1 + $0x14] sm:$0xf]
  %v50 = vld [vmem:[%s1 + $0x18] sm:$0xf]
  %v51 = vld [vmem:[%s1 + $0x1c] sm:$0xf]
  %v52 = vld [vmem:[%s1 + $0x20] sm:$0xf]
  %v53 = vld [vmem:[%s1 + $0x24] sm:$0xf]
  %v54 = vld [vmem:[%s1 + $0x28] sm:$0xf]
  %v55 = vld [vmem:[%s1 + $0x2c] sm:$0xf]
  %v56 = vld [vmem:[%s1 + $0x30] sm:$0xf]
  %v57 = vld [vmem:[%s1 + $0x34] sm:$0xf]
  %v58 = vld [vmem:[%s1 + $0x38] sm:$0xf]
  %v59 = vld [vmem:[%s1 + $0x3c] sm:$0xf]
  %v76 = vunpack.c.l.b16 %v44
  %v77 = vunpack.c.l.b16 %v45
  %v78 = vunpack.c.l.b16 %v46
  %v79 = vunpack.c.l.b16 %v47
  %v80 = vunpack.c.l.b16 %v48
  %v81 = vunpack.c.l.b16 %v49
  %v82 = vunpack.c.l.b16 %v50
  %v83 = vunpack.c.l.b16 %v51
  %v84 = vunpack.c.l.b16 %v52
  %v85 = vunpack.c.l.b16 %v53
  %v86 = vunpack.c.l.b16 %v54
  %v87 = vunpack.c.l.b16 %v55
  %v88 = vunpack.c.l.b16 %v56
  %v89 = vunpack.c.l.b16 %v57
  %v90 = vunpack.c.l.b16 %v58
  %v91 = vunpack.c.l.b16 %v59
  %v92 = vpack.c.b16 %v77, %v76
  %v93 = vpack.c.b16 %v79, %v78
  %v94 = vpack.c.b16 %v81, %v80
  %v95 = vpack.c.b16 %v83, %v82
  %v96 = vpack.c.b16 %v85, %v84
  %v97 = vpack.c.b16 %v87, %v86
  %v98 = vpack.c.b16 %v89, %v88
  %v99 = vpack.c.b16 %v91, %v90
  %108 = vmatpush.bf16.msra.mxu0 %v99
  %109 = vmatpush.bf16.msra.mxu0 %v98
  %110 = vmatpush.bf16.msra.mxu0 %v97
  %111 = vmatpush.bf16.msra.mxu0 %v96
  %112 = vmatpush.bf16.msra.mxu0 %v95
  %113 = vmatpush.bf16.msra.mxu0 %v94
  %114 = vmatpush.bf16.msra.mxu0 %v93
  %115 = vmatpush.bf16.msra.mxu0 %v92
  %116 = vmatmul.bf16.gmra.mxu0 %v36
  %v117 = vpop.f32.mrf.mxu0
  %v118 = vadd.f32 0.0, %v117
  %v119 = vpop.f32.mrf.mxu0
  %v120 = vadd.f32 0.0, %v119
  %121 = vmatmul.bf16.gmra.mxu0 %v37
  %v122 = vpop.f32.mrf.mxu0
  %v123 = vadd.f32 0.0, %v122
  %v124 = vpop.f32.mrf.mxu0
  %v125 = vadd.f32 0.0, %v124
  %126 = vmatmul.bf16.gmra.mxu0 %v38
  %v127 = vpop.f32.mrf.mxu0
  %v128 = vadd.f32 0.0, %v127
  %v129 = vpop.f32.mrf.mxu0
  %v130 = vadd.f32 0.0, %v129
  %131 = vmatmul.bf16.gmra.mxu0 %v39
  %v132 = vpop.f32.mrf.mxu0
  %v133 = vadd.f32 0.0, %v132
  %v134 = vpop.f32.mrf.mxu0
  %v135 = vadd.f32 0.0, %v134
  %136 = vmatmul.bf16.gmra.mxu0 %v40
  %v137 = vpop.f32.mrf.mxu0
  %v138 = vadd.f32 0.0, %v137
  %v139 = vpop.f32.mrf.mxu0
  %v140 = vadd.f32 0.0, %v139
  %141 = vmatmul.bf16.gmra.mxu0 %v41
  %v142 = vpop.f32.mrf.mxu0
  %v143 = vadd.f32 0.0, %v142
  %v144 = vpop.f32.mrf.mxu0
  %v145 = vadd.f32 0.0, %v144
  %146 = vmatmul.bf16.gmra.mxu0 %v42
  %v147 = vpop.f32.mrf.mxu0
  %v148 = vadd.f32 0.0, %v147
  %v149 = vpop.f32.mrf.mxu0
  %v150 = vadd.f32 0.0, %v149
  %151 = vmatmul.bf16.gmra.mxu0 %v43
  %v152 = vpop.f32.mrf.mxu0
  %v153 = vadd.f32 0.0, %v152
  %v154 = vpop.f32.mrf.mxu0
  %v155 = vadd.f32 0.0, %v154
  %156 = vdwg.mxu0
  %v157 = vpack.c.bf16 %v118, %v118
  %v158 = vpack.c.bf16 %v120, %v120
  %v159 = vpack.c.bf16 %v123, %v123
  %v160 = vpack.c.bf16 %v125, %v125
  %v161 = vpack.c.bf16 %v128, %v128
  %v162 = vpack.c.bf16 %v130, %v130
  %v163 = vpack.c.bf16 %v133, %v133
  %v164 = vpack.c.bf16 %v135, %v135
  %v165 = vpack.c.bf16 %v138, %v138
  %v166 = vpack.c.bf16 %v140, %v140
  %v167 = vpack.c.bf16 %v143, %v143
  %v168 = vpack.c.bf16 %v145, %v145
  %v169 = vpack.c.bf16 %v148, %v148
  %v170 = vpack.c.bf16 %v150, %v150
  %v171 = vpack.c.bf16 %v153, %v153
  %v172 = vpack.c.bf16 %v155, %v155
  %173 = vst [vmem:[%s4] sm:$0xf] %v157
  %174 = vst [vmem:[%s4 + $0x4] sm:$0xf] %v158
  %175 = vst [vmem:[%s4 + $0x8] sm:$0xf] %v159
  %176 = vst [vmem:[%s4 + $0xc] sm:$0xf] %v160
  %177 = vst [vmem:[%s4 + $0x10] sm:$0xf] %v161
  %178 = vst [vmem:[%s4 + $0x14] sm:$0xf] %v162
  %179 = vst [vmem:[%s4 + $0x18] sm:$0xf] %v163
  %180 = vst [vmem:[%s4 + $0x1c] sm:$0xf] %v164
  %181 = vst [vmem:[%s4 + $0x20] sm:$0xf] %v165
  %182 = vst [vmem:[%s4 + $0x24] sm:$0xf] %v166
  %183 = vst [vmem:[%s4 + $0x28] sm:$0xf] %v167
  %184 = vst [vmem:[%s4 + $0x2c] sm:$0xf] %v168
  %185 = vst [vmem:[%s4 + $0x30] sm:$0xf] %v169
  %186 = vst [vmem:[%s4 + $0x34] sm:$0xf] %v170
  %187 = vst [vmem:[%s4 + $0x38] sm:$0xf] %v171
  %188 = vst [vmem:[%s4 + $0x3c] sm:$0xf] %v172
  %v189 = vld [vmem:[%s2] sm:$0x1]
  %v191 = vperm.slane %v189, 0
  %v193 = vmul.f32 %v118, %v191
  %v194 = vmul.f32 %v120, %v191
  %v195 = vmul.f32 %v123, %v191
  %v196 = vmul.f32 %v125, %v191
  %v197 = vmul.f32 %v128, %v191
  %v198 = vmul.f32 %v130, %v191
  %v199 = vmul.f32 %v133, %v191
  %v200 = vmul.f32 %v135, %v191
  %v201 = vmul.f32 %v138, %v191
  %v202 = vmul.f32 %v140, %v191
  %v203 = vmul.f32 %v143, %v191
  %v204 = vmul.f32 %v145, %v191
  %v205 = vmul.f32 %v148, %v191
  %v206 = vmul.f32 %v150, %v191
  %v207 = vmul.f32 %v153, %v191
  %v208 = vmul.f32 %v155, %v191
  %209 = vadd.xlane.f32.xlu0 %v193
  %v210 = vpop.xlane.xlu0 %209
  %211 = vadd.xlane.f32.xlu0 %v194
  %v212 = vpop.xlane.xlu0 %211
  %213 = vadd.xlane.f32.xlu0 %v195
  %v214 = vpop.xlane.xlu0 %213
  %215 = vadd.xlane.f32.xlu0 %v196
  %v216 = vpop.xlane.xlu0 %215
  %217 = vadd.xlane.f32.xlu0 %v197
  %v218 = vpop.xlane.xlu0 %217
  %219 = vadd.xlane.f32.xlu0 %v198
  %v220 = vpop.xlane.xlu0 %219
  %221 = vadd.xlane.f32.xlu0 %v199
  %v222 = vpop.xlane.xlu0 %221
  %223 = vadd.xlane.f32.xlu0 %v200
  %v224 = vpop.xlane.xlu0 %223
  %225 = vadd.xlane.f32.xlu0 %v201
  %v226 = vpop.xlane.xlu0 %225
  %227 = vadd.xlane.f32.xlu0 %v202
  %v228 = vpop.xlane.xlu0 %227
  %229 = vadd.xlane.f32.xlu0 %v203
  %v230 = vpop.xlane.xlu0 %229
  %231 = vadd.xlane.f32.xlu0 %v204
  %v232 = vpop.xlane.xlu0 %231
  %233 = vadd.xlane.f32.xlu0 %v205
  %v234 = vpop.xlane.xlu0 %233
  %235 = vadd.xlane.f32.xlu0 %v206
  %v236 = vpop.xlane.xlu0 %235
  %237 = vadd.xlane.f32.xlu0 %v207
  %v238 = vpop.xlane.xlu0 %237
  %239 = vadd.xlane.f32.xlu0 %v208
  %v240 = vpop.xlane.xlu0 %239
  %vm241 = vcmask 7168
  %242 = vst.msk [vmem:[%s5] sm:$0xff] %vm241, %v210
  %243 = vst.msk [vmem:[%s5 + $0x8] sm:$0xff] %vm241, %v212
  %244 = vst.msk [vmem:[%s5 + $0x10] sm:$0xff] %vm241, %v214
  %245 = vst.msk [vmem:[%s5 + $0x18] sm:$0xff] %vm241, %v216
  %246 = vst.msk [vmem:[%s5 + $0x20] sm:$0xff] %vm241, %v218
  %247 = vst.msk [vmem:[%s5 + $0x28] sm:$0xff] %vm241, %v220
  %248 = vst.msk [vmem:[%s5 + $0x30] sm:$0xff] %vm241, %v222
  %249 = vst.msk [vmem:[%s5 + $0x38] sm:$0xff] %vm241, %v224
  %250 = vst.msk [vmem:[%s5 + $0x40] sm:$0xff] %vm241, %v226
  %251 = vst.msk [vmem:[%s5 + $0x48] sm:$0xff] %vm241, %v228
  %252 = vst.msk [vmem:[%s5 + $0x50] sm:$0xff] %vm241, %v230
  %253 = vst.msk [vmem:[%s5 + $0x58] sm:$0xff] %vm241, %v232
  %254 = vst.msk [vmem:[%s5 + $0x60] sm:$0xff] %vm241, %v234
  %255 = vst.msk [vmem:[%s5 + $0x68] sm:$0xff] %vm241, %v236
  %256 = vst.msk [vmem:[%s5 + $0x70] sm:$0xff] %vm241, %v238
  %257 = vst.msk [vmem:[%s5 + $0x78] sm:$0xff] %vm241, %v240
  %v258 = vld [vmem:[%s3] sm:$0x1]
  %v260 = vperm.slane %v258, 0
  %v262 = vmul.f32 %v118, %v260
  %v263 = vmul.f32 %v120, %v260
  %v264 = vmul.f32 %v123, %v260
  %v265 = vmul.f32 %v125, %v260
  %v266 = vmul.f32 %v128, %v260
  %v267 = vmul.f32 %v130, %v260
  %v268 = vmul.f32 %v133, %v260
  %v269 = vmul.f32 %v135, %v260
  %v270 = vmul.f32 %v138, %v260
  %v271 = vmul.f32 %v140, %v260
  %v272 = vmul.f32 %v143, %v260
  %v273 = vmul.f32 %v145, %v260
  %v274 = vmul.f32 %v148, %v260
  %v275 = vmul.f32 %v150, %v260
  %v276 = vmul.f32 %v153, %v260
  %v277 = vmul.f32 %v155, %v260
  %278 = vadd.xlane.f32.xlu0 %v262
  %v279 = vpop.xlane.xlu0 %278
  %280 = vadd.xlane.f32.xlu0 %v263
  %v281 = vpop.xlane.xlu0 %280
  %282 = vadd.xlane.f32.xlu0 %v264
  %v283 = vpop.xlane.xlu0 %282
  %284 = vadd.xlane.f32.xlu0 %v265
  %v285 = vpop.xlane.xlu0 %284
  %286 = vadd.xlane.f32.xlu0 %v266
  %v287 = vpop.xlane.xlu0 %286
  %288 = vadd.xlane.f32.xlu0 %v267
  %v289 = vpop.xlane.xlu0 %288
  %290 = vadd.xlane.f32.xlu0 %v268
  %v291 = vpop.xlane.xlu0 %290
  %292 = vadd.xlane.f32.xlu0 %v269
  %v293 = vpop.xlane.xlu0 %292
  %294 = vadd.xlane.f32.xlu0 %v270
  %v295 = vpop.xlane.xlu0 %294
  %296 = vadd.xlane.f32.xlu0 %v271
  %v297 = vpop.xlane.xlu0 %296
  %298 = vadd.xlane.f32.xlu0 %v272
  %v299 = vpop.xlane.xlu0 %298
  %300 = vadd.xlane.f32.xlu0 %v273
  %v301 = vpop.xlane.xlu0 %300
  %302 = vadd.xlane.f32.xlu0 %v274
  %v303 = vpop.xlane.xlu0 %302
  %304 = vadd.xlane.f32.xlu0 %v275
  %v305 = vpop.xlane.xlu0 %304
  %306 = vadd.xlane.f32.xlu0 %v276
  %v307 = vpop.xlane.xlu0 %306
  %308 = vadd.xlane.f32.xlu0 %v277
  %v309 = vpop.xlane.xlu0 %308
  %310 = vst.msk [vmem:[%s6] sm:$0xff] %vm241, %v279
  %311 = vst.msk [vmem:[%s6 + $0x8] sm:$0xff] %vm241, %v281
  %312 = vst.msk [vmem:[%s6 + $0x10] sm:$0xff] %vm241, %v283
  %313 = vst.msk [vmem:[%s6 + $0x18] sm:$0xff] %vm241, %v285
  %314 = vst.msk [vmem:[%s6 + $0x20] sm:$0xff] %vm241, %v287
  %315 = vst.msk [vmem:[%s6 + $0x28] sm:$0xff] %vm241, %v289
  %316 = vst.msk [vmem:[%s6 + $0x30] sm:$0xff] %vm241, %v291
  %317 = vst.msk [vmem:[%s6 + $0x38] sm:$0xff] %vm241, %v293
  %318 = vst.msk [vmem:[%s6 + $0x40] sm:$0xff] %vm241, %v295
  %319 = vst.msk [vmem:[%s6 + $0x48] sm:$0xff] %vm241, %v297
  %320 = vst.msk [vmem:[%s6 + $0x50] sm:$0xff] %vm241, %v299
  %321 = vst.msk [vmem:[%s6 + $0x58] sm:$0xff] %vm241, %v301
  %322 = vst.msk [vmem:[%s6 + $0x60] sm:$0xff] %vm241, %v303
  %323 = vst.msk [vmem:[%s6 + $0x68] sm:$0xff] %vm241, %v305
  %324 = vst.msk [vmem:[%s6 + $0x70] sm:$0xff] %vm241, %v307
  %325 = vst.msk [vmem:[%s6 + $0x78] sm:$0xff] %vm241, %v309
  // Predicated region
  $region18: #{gat_forward.4} parent=0 // pred_check
    _
  $region19: #{gat_forward.4} parent=0 // pred_check_branch
    %327 = sbr.rel (0) target = $region21
  $region20: #{gat_forward.4} parent=0 // pred_region
    _
  $region21: #{gat_forward.4} parent=0 // pred_fallthru
    _
  // Predicated region
  $region22: #{gat_forward.4} parent=0 // pred_check
    _
  $region23: #{gat_forward.4} parent=0 // pred_check_branch
    %329 = sbr.rel (0) target = $region25
  $region24: #{gat_forward.4} parent=0 // pred_region
    _
  $region25: #{gat_forward.4} parent=0 // pred_fallthru
    _
  // Predicated region
  $region26: #{gat_forward.4} parent=0 // pred_check
    _
  $region27: #{gat_forward.4} parent=0 // pred_check_branch
    %331 = sbr.rel (0) target = $region29
  $region28: #{gat_forward.4} parent=0 // pred_region
    _
  $region29: #{gat_forward.4} parent=0 // pred_fallthru
    _
  // Predicated region
  $region30: #{gat_forward.4} parent=0 // pred_check
    _
  $region31: #{gat_forward.4} parent=0 // pred_check_branch
    %333 = sbr.rel (0) target = $region33
  $region32: #{gat_forward.4} parent=0 // pred_region
    _
  $region33: #{gat_forward.4} parent=0 // pred_fallthru
    _
  // Predicated region
  $region34: #{gat_forward.4} parent=0 // pred_check
    _
  $region35: #{gat_forward.4} parent=0 // pred_check_branch
    %335 = sbr.rel (0) target = $region37
  $region36: #{gat_forward.4} parent=0 // pred_region
    _
  $region37: #{gat_forward.4} parent=0 // pred_fallthru
    _
  // Predicated region
  $region38: #{gat_forward.4} parent=0 // pred_check
    _
  $region39: #{gat_forward.4} parent=0 // pred_check_branch
    %337 = sbr.rel (0) target = $region41
  $region40: #{gat_forward.4} parent=0 // pred_region
    _
  $region41: #{gat_forward.4} parent=0 // pred_fallthru
    _

// kernel: gat_forward.5
$region0: #{gat_forward.5}
  #allocation0 [shape = 'u32[]', space=smem, size = 0x4, offset = 0x4, fixed_abs, tag = 'smem constant byte address 0x4 - core index']
  #allocation1 [shape = 'u32[72,128]{1,0:T(1,128)}', space=vmem, size = 0x9000, scoped, tag = 'internal scratch']
  %s0 = inlined_call_operand.vmem [shape: bf16[128,128], index: 0, kind: input, shape index: {}]
  %s1 = inlined_call_operand.vmem [shape: f32[1,128], index: 1, kind: input, shape index: {}]
  %s2 = inlined_call_operand.vmem [shape: f32[128,1], index: 2, kind: input, shape index: {}]
  %s3 = inlined_call_operand.vmem [shape: f32[1,128], index: 3, kind: input, shape index: {}]
  %s4 = inlined_call_operand.vmem [shape: bf16[128,128], index: 4, kind: input, shape index: {}]
  %s5 = inlined_call_operand.vmem [shape: f32[128,128], index: 5, kind: output, shape index: {}]
  %s6 = sld [smem:[#allocation0]]
  $region30: #{gat_forward.5} parent=0
    _
  %s8 = ssub.s32 1, %s6
  %s9 = scalar_select 0, %s8, %s6
  // Predicated region
  $region2: #{gat_forward.5} parent=0 // pred_check
    _
  $region3: #{gat_forward.5} parent=0 // pred_check_branch
    %11 = sbr.rel (0) target = $region5
  $region4: #{gat_forward.5} parent=0 // pred_region
    _
  $region5: #{gat_forward.5} parent=0 // pred_fallthru
    _
  // Predicated region
  $region6: #{gat_forward.5} parent=0 // pred_check
    _
  $region7: #{gat_forward.5} parent=0 // pred_check_branch
    %13 = sbr.rel (0) target = $region9
  $region8: #{gat_forward.5} parent=0 // pred_region
    _
  $region9: #{gat_forward.5} parent=0 // pred_fallthru
    _
  // Predicated region
  $region10: #{gat_forward.5} parent=0 // pred_check
    _
  $region11: #{gat_forward.5} parent=0 // pred_check_branch
    %15 = sbr.rel (0) target = $region13
  $region12: #{gat_forward.5} parent=0 // pred_region
    _
  $region13: #{gat_forward.5} parent=0 // pred_fallthru
    _
  // Predicated region
  $region14: #{gat_forward.5} parent=0 // pred_check
    _
  $region15: #{gat_forward.5} parent=0 // pred_check_branch
    %17 = sbr.rel (0) target = $region17
  $region16: #{gat_forward.5} parent=0 // pred_region
    _
  $region17: #{gat_forward.5} parent=0 // pred_fallthru
    _
  // Predicated region
  $region18: #{gat_forward.5} parent=0 // pred_check
    _
  $region19: #{gat_forward.5} parent=0 // pred_check_branch
    %19 = sbr.rel (0) target = $region21
  $region20: #{gat_forward.5} parent=0 // pred_region
    _
  $region21: #{gat_forward.5} parent=0 // pred_fallthru
    _
  %v20 = vld [vmem:[%s2] sm:$0xff]
  %v21 = vld [vmem:[%s2 + $0x8] sm:$0xff]
  %v22 = vld [vmem:[%s2 + $0x10] sm:$0xff]
  %v23 = vld [vmem:[%s2 + $0x18] sm:$0xff]
  %v24 = vld [vmem:[%s2 + $0x20] sm:$0xff]
  %v25 = vld [vmem:[%s2 + $0x28] sm:$0xff]
  %v26 = vld [vmem:[%s2 + $0x30] sm:$0xff]
  %v27 = vld [vmem:[%s2 + $0x38] sm:$0xff]
  %v28 = vld [vmem:[%s2 + $0x40] sm:$0xff]
  %v29 = vld [vmem:[%s2 + $0x48] sm:$0xff]
  %v30 = vld [vmem:[%s2 + $0x50] sm:$0xff]
  %v31 = vld [vmem:[%s2 + $0x58] sm:$0xff]
  %v32 = vld [vmem:[%s2 + $0x60] sm:$0xff]
  %v33 = vld [vmem:[%s2 + $0x68] sm:$0xff]
  %v34 = vld [vmem:[%s2 + $0x70] sm:$0xff]
  %v35 = vld [vmem:[%s2 + $0x78] sm:$0xff]
  %v36 = vld [vmem:[%s1] sm:$0x1]
  %38 = vset.pattern.permute.xlu0 0
  %39 = vperm.xlu0 %38, %v20
  %v40 = vpop.permute.xlu0 %39
  %43 = vset.pattern.permute.xlu0 0
  %44 = vperm.xlu0 %43, %v21
  %v45 = vpop.permute.xlu0 %44
  %48 = vset.pattern.permute.xlu0 0
  %49 = vperm.xlu0 %48, %v22
  %v50 = vpop.permute.xlu0 %49
  %53 = vset.pattern.permute.xlu0 0
  %54 = vperm.xlu0 %53, %v23
  %v55 = vpop.permute.xlu0 %54
  %58 = vset.pattern.permute.xlu0 0
  %59 = vperm.xlu0 %58, %v24
  %v60 = vpop.permute.xlu0 %59
  %63 = vset.pattern.permute.xlu0 0
  %64 = vperm.xlu0 %63, %v25
  %v65 = vpop.permute.xlu0 %64
  %68 = vset.pattern.permute.xlu0 0
  %69 = vperm.xlu0 %68, %v26
  %v70 = vpop.permute.xlu0 %69
  %73 = vset.pattern.permute.xlu0 0
  %74 = vperm.xlu0 %73, %v27
  %v75 = vpop.permute.xlu0 %74
  %78 = vset.pattern.permute.xlu0 0
  %79 = vperm.xlu0 %78, %v28
  %v80 = vpop.permute.xlu0 %79
  %83 = vset.pattern.permute.xlu0 0
  %84 = vperm.xlu0 %83, %v29
  %v85 = vpop.permute.xlu0 %84
  %88 = vset.pattern.permute.xlu0 0
  %89 = vperm.xlu0 %88, %v30
  %v90 = vpop.permute.xlu0 %89
  %93 = vset.pattern.permute.xlu0 0
  %94 = vperm.xlu0 %93, %v31
  %v95 = vpop.permute.xlu0 %94
  %98 = vset.pattern.permute.xlu0 0
  %99 = vperm.xlu0 %98, %v32
  %v100 = vpop.permute.xlu0 %99
  %103 = vset.pattern.permute.xlu0 0
  %104 = vperm.xlu0 %103, %v33
  %v105 = vpop.permute.xlu0 %104
  %108 = vset.pattern.permute.xlu0 0
  %109 = vperm.xlu0 %108, %v34
  %v110 = vpop.permute.xlu0 %109
  %113 = vset.pattern.permute.xlu0 0
  %114 = vperm.xlu0 %113, %v35
  %v115 = vpop.permute.xlu0 %114
  %v118 = vperm.slane %v36, 0
  %v120 = vadd.f32 %v40, %v118
  %v121 = vadd.f32 %v45, %v118
  %v122 = vadd.f32 %v50, %v118
  %v123 = vadd.f32 %v55, %v118
  %v124 = vadd.f32 %v60, %v118
  %v125 = vadd.f32 %v65, %v118
  %v126 = vadd.f32 %v70, %v118
  %v127 = vadd.f32 %v75, %v118
  %v128 = vadd.f32 %v80, %v118
  %v129 = vadd.f32 %v85, %v118
  %v130 = vadd.f32 %v90, %v118
  %v131 = vadd.f32 %v95, %v118
  %v132 = vadd.f32 %v100, %v118
  %v133 = vadd.f32 %v105, %v118
  %v134 = vadd.f32 %v110, %v118
  %v135 = vadd.f32 %v115, %v118
  %v136 = vmul.f32 %v120, 0.2
  %v137 = vmul.f32 %v121, 0.2
  %v138 = vmul.f32 %v122, 0.2
  %v139 = vmul.f32 %v123, 0.2
  %v140 = vmul.f32 %v124, 0.2
  %v141 = vmul.f32 %v125, 0.2
  %v142 = vmul.f32 %v126, 0.2
  %v143 = vmul.f32 %v127, 0.2
  %v144 = vmul.f32 %v128, 0.2
  %v145 = vmul.f32 %v129, 0.2
  %v146 = vmul.f32 %v130, 0.2
  %v147 = vmul.f32 %v131, 0.2
  %v148 = vmul.f32 %v132, 0.2
  %v149 = vmul.f32 %v133, 0.2
  %v150 = vmul.f32 %v134, 0.2
  %v151 = vmul.f32 %v135, 0.2
  %v152 = vmax.f32 %v120, %v136
  %v153 = vmax.f32 %v121, %v137
  %v154 = vmax.f32 %v122, %v138
  %v155 = vmax.f32 %v123, %v139
  %v156 = vmax.f32 %v124, %v140
  %v157 = vmax.f32 %v125, %v141
  %v158 = vmax.f32 %v126, %v142
  %v159 = vmax.f32 %v127, %v143
  %v160 = vmax.f32 %v128, %v144
  %v161 = vmax.f32 %v129, %v145
  %v162 = vmax.f32 %v130, %v146
  %v163 = vmax.f32 %v131, %v147
  %v164 = vmax.f32 %v132, %v148
  %v165 = vmax.f32 %v133, %v149
  %v166 = vmax.f32 %v134, %v150
  %v167 = vmax.f32 %v135, %v151
  %v168 = vld [vmem:[%s4] sm:$0xf]
  %v169 = vld [vmem:[%s4 + $0x4] sm:$0xf]
  %v170 = vld [vmem:[%s4 + $0x8] sm:$0xf]
  %v171 = vld [vmem:[%s4 + $0xc] sm:$0xf]
  %v172 = vld [vmem:[%s4 + $0x10] sm:$0xf]
  %v173 = vld [vmem:[%s4 + $0x14] sm:$0xf]
  %v174 = vld [vmem:[%s4 + $0x18] sm:$0xf]
  %v175 = vld [vmem:[%s4 + $0x1c] sm:$0xf]
  %v176 = vld [vmem:[%s4 + $0x20] sm:$0xf]
  %v177 = vld [vmem:[%s4 + $0x24] sm:$0xf]
  %v178 = vld [vmem:[%s4 + $0x28] sm:$0xf]
  %v179 = vld [vmem:[%s4 + $0x2c] sm:$0xf]
  %v180 = vld [vmem:[%s4 + $0x30] sm:$0xf]
  %v181 = vld [vmem:[%s4 + $0x34] sm:$0xf]
  %v182 = vld [vmem:[%s4 + $0x38] sm:$0xf]
  %v183 = vld [vmem:[%s4 + $0x3c] sm:$0xf]
  %v184 = vunpack.c.l.bf16 %v168
  %v185 = vunpack.c.l.bf16 %v169
  %v186 = vunpack.c.l.bf16 %v170
  %v187 = vunpack.c.l.bf16 %v171
  %v188 = vunpack.c.l.bf16 %v172
  %v189 = vunpack.c.l.bf16 %v173
  %v190 = vunpack.c.l.bf16 %v174
  %v191 = vunpack.c.l.bf16 %v175
  %v192 = vunpack.c.l.bf16 %v176
  %v193 = vunpack.c.l.bf16 %v177
  %v194 = vunpack.c.l.bf16 %v178
  %v195 = vunpack.c.l.bf16 %v179
  %v196 = vunpack.c.l.bf16 %v180
  %v197 = vunpack.c.l.bf16 %v181
  %v198 = vunpack.c.l.bf16 %v182
  %v199 = vunpack.c.l.bf16 %v183
  %v200 = vadd.f32 %v152, %v184
  %v201 = vadd.f32 %v153, %v185
  %v202 = vadd.f32 %v154, %v186
  %v203 = vadd.f32 %v155, %v187
  %v204 = vadd.f32 %v156, %v188
  %v205 = vadd.f32 %v157, %v189
  %v206 = vadd.f32 %v158, %v190
  %v207 = vadd.f32 %v159, %v191
  %v208 = vadd.f32 %v160, %v192
  %v209 = vadd.f32 %v161, %v193
  %v210 = vadd.f32 %v162, %v194
  %v211 = vadd.f32 %v163, %v195
  %v212 = vadd.f32 %v164, %v196
  %v213 = vadd.f32 %v165, %v197
  %v214 = vadd.f32 %v166, %v198
  %v215 = vadd.f32 %v167, %v199
  %216 = vmax.xlane.f32.xlu0 %v200
  %v217 = vpop.xlane.xlu0 %216
  %218 = vmax.xlane.f32.xlu0 %v201
  %v219 = vpop.xlane.xlu0 %218
  %220 = vmax.xlane.f32.xlu0 %v202
  %v221 = vpop.xlane.xlu0 %220
  %222 = vmax.xlane.f32.xlu0 %v203
  %v223 = vpop.xlane.xlu0 %222
  %224 = vmax.xlane.f32.xlu0 %v204
  %v225 = vpop.xlane.xlu0 %224
  %226 = vmax.xlane.f32.xlu0 %v205
  %v227 = vpop.xlane.xlu0 %226
  %228 = vmax.xlane.f32.xlu0 %v206
  %v229 = vpop.xlane.xlu0 %228
  %230 = vmax.xlane.f32.xlu0 %v207
  %v231 = vpop.xlane.xlu0 %230
  %232 = vmax.xlane.f32.xlu0 %v208
  %v233 = vpop.xlane.xlu0 %232
  %234 = vmax.xlane.f32.xlu0 %v209
  %v235 = vpop.xlane.xlu0 %234
  %236 = vmax.xlane.f32.xlu0 %v210
  %v237 = vpop.xlane.xlu0 %236
  %238 = vmax.xlane.f32.xlu0 %v211
  %v239 = vpop.xlane.xlu0 %238
  %240 = vmax.xlane.f32.xlu0 %v212
  %v241 = vpop.xlane.xlu0 %240
  %242 = vmax.xlane.f32.xlu0 %v213
  %v243 = vpop.xlane.xlu0 %242
  %244 = vmax.xlane.f32.xlu0 %v214
  %v245 = vpop.xlane.xlu0 %244
  %246 = vmax.xlane.f32.xlu0 %v215
  %v247 = vpop.xlane.xlu0 %246
  %v248 = vsub.f32 %v200, %v217
  %v249 = vsub.f32 %v201, %v219
  %v250 = vsub.f32 %v202, %v221
  %v251 = vsub.f32 %v203, %v223
  %v252 = vsub.f32 %v204, %v225
  %v253 = vsub.f32 %v205, %v227
  %v254 = vsub.f32 %v206, %v229
  %v255 = vsub.f32 %v207, %v231
  %v256 = vsub.f32 %v208, %v233
  %v257 = vsub.f32 %v209, %v235
  %v258 = vsub.f32 %v210, %v237
  %v259 = vsub.f32 %v211, %v239
  %v260 = vsub.f32 %v212, %v241
  %v261 = vsub.f32 %v213, %v243
  %v262 = vsub.f32 %v214, %v245
  %v263 = vsub.f32 %v215, %v247
  %v264 = vmul.f32 %v248, 1.442695
  %v265 = vpow.pop %v264
  %v266 = vmul.f32 %v249, 1.442695
  %v267 = vpow.pop %v266
  %v268 = vmul.f32 %v250, 1.442695
  %v269 = vpow.pop %v268
  %v270 = vmul.f32 %v251, 1.442695
  %v271 = vpow.pop %v270
  %v272 = vmul.f32 %v252, 1.442695
  %v273 = vpow.pop %v272
  %v274 = vmul.f32 %v253, 1.442695
  %v275 = vpow.pop %v274
  %v276 = vmul.f32 %v254, 1.442695
  %v277 = vpow.pop %v276
  %v278 = vmul.f32 %v255, 1.442695
  %v279 = vpow.pop %v278
  %v280 = vmul.f32 %v256, 1.442695
  %v281 = vpow.pop %v280
  %v282 = vmul.f32 %v257, 1.442695
  %v283 = vpow.pop %v282
  %v284 = vmul.f32 %v258, 1.442695
  %v285 = vpow.pop %v284
  %v286 = vmul.f32 %v259, 1.442695
  %v287 = vpow.pop %v286
  %v288 = vmul.f32 %v260, 1.442695
  %v289 = vpow.pop %v288
  %v290 = vmul.f32 %v261, 1.442695
  %v291 = vpow.pop %v290
  %v292 = vmul.f32 %v262, 1.442695
  %v293 = vpow.pop %v292
  %v294 = vmul.f32 %v263, 1.442695
  %v295 = vpow.pop %v294
  %296 = vadd.xlane.f32.xlu0 %v265
  %v297 = vpop.xlane.xlu0 %296
  %298 = vadd.xlane.f32.xlu0 %v267
  %v299 = vpop.xlane.xlu0 %298
  %300 = vadd.xlane.f32.xlu0 %v269
  %v301 = vpop.xlane.xlu0 %300
  %302 = vadd.xlane.f32.xlu0 %v271
  %v303 = vpop.xlane.xlu0 %302
  %304 = vadd.xlane.f32.xlu0 %v273
  %v305 = vpop.xlane.xlu0 %304
  %306 = vadd.xlane.f32.xlu0 %v275
  %v307 = vpop.xlane.xlu0 %306
  %308 = vadd.xlane.f32.xlu0 %v277
  %v309 = vpop.xlane.xlu0 %308
  %310 = vadd.xlane.f32.xlu0 %v279
  %v311 = vpop.xlane.xlu0 %310
  %312 = vadd.xlane.f32.xlu0 %v281
  %v313 = vpop.xlane.xlu0 %312
  %314 = vadd.xlane.f32.xlu0 %v283
  %v315 = vpop.xlane.xlu0 %314
  %316 = vadd.xlane.f32.xlu0 %v285
  %v317 = vpop.xlane.xlu0 %316
  %318 = vadd.xlane.f32.xlu0 %v287
  %v319 = vpop.xlane.xlu0 %318
  %320 = vadd.xlane.f32.xlu0 %v289
  %v321 = vpop.xlane.xlu0 %320
  %322 = vadd.xlane.f32.xlu0 %v291
  %v323 = vpop.xlane.xlu0 %322
  %324 = vadd.xlane.f32.xlu0 %v293
  %v325 = vpop.xlane.xlu0 %324
  %326 = vadd.xlane.f32.xlu0 %v295
  %v327 = vpop.xlane.xlu0 %326
  %v328 = vpack.c.bf16 %v267, %v265
  %v329 = vpack.c.bf16 %v271, %v269
  %v330 = vpack.c.bf16 %v275, %v273
  %v331 = vpack.c.bf16 %v279, %v277
  %v332 = vpack.c.bf16 %v283, %v281
  %v333 = vpack.c.bf16 %v287, %v285
  %v334 = vpack.c.bf16 %v291, %v289
  %v335 = vpack.c.bf16 %v295, %v293
  %v336 = vld [vmem:[%s0] sm:$0xf]
  %v337 = vld [vmem:[%s0 + $0x4] sm:$0xf]
  %v338 = vld [vmem:[%s0 + $0x8] sm:$0xf]
  %v339 = vld [vmem:[%s0 + $0xc] sm:$0xf]
  %v340 = vld [vmem:[%s0 + $0x10] sm:$0xf]
  %v341 = vld [vmem:[%s0 + $0x14] sm:$0xf]
  %v342 = vld [vmem:[%s0 + $0x18] sm:$0xf]
  %v343 = vld [vmem:[%s0 + $0x1c] sm:$0xf]
  %v344 = vld [vmem:[%s0 + $0x20] sm:$0xf]
  %v345 = vld [vmem:[%s0 + $0x24] sm:$0xf]
  %v346 = vld [vmem:[%s0 + $0x28] sm:$0xf]
  %v347 = vld [vmem:[%s0 + $0x2c] sm:$0xf]
  %v348 = vld [vmem:[%s0 + $0x30] sm:$0xf]
  %v349 = vld [vmem:[%s0 + $0x34] sm:$0xf]
  %v350 = vld [vmem:[%s0 + $0x38] sm:$0xf]
  %v351 = vld [vmem:[%s0 + $0x3c] sm:$0xf]
  %v368 = vunpack.c.l.b16 %v336
  %v369 = vunpack.c.l.b16 %v337
  %v370 = vunpack.c.l.b16 %v338
  %v371 = vunpack.c.l.b16 %v339
  %v372 = vunpack.c.l.b16 %v340
  %v373 = vunpack.c.l.b16 %v341
  %v374 = vunpack.c.l.b16 %v342
  %v375 = vunpack.c.l.b16 %v343
  %v376 = vunpack.c.l.b16 %v344
  %v377 = vunpack.c.l.b16 %v345
  %v378 = vunpack.c.l.b16 %v346
  %v379 = vunpack.c.l.b16 %v347
  %v380 = vunpack.c.l.b16 %v348
  %v381 = vunpack.c.l.b16 %v349
  %v382 = vunpack.c.l.b16 %v350
  %v383 = vunpack.c.l.b16 %v351
  %v384 = vpack.c.b16 %v369, %v368
  %v385 = vpack.c.b16 %v371, %v370
  %v386 = vpack.c.b16 %v373, %v372
  %v387 = vpack.c.b16 %v375, %v374
  %v388 = vpack.c.b16 %v377, %v376
  %v389 = vpack.c.b16 %v379, %v378
  %v390 = vpack.c.b16 %v381, %v380
  %v391 = vpack.c.b16 %v383, %v382
  %400 = vmatpush.bf16.msra.mxu0 %v391
  %401 = vmatpush.bf16.msra.mxu0 %v390
  %402 = vmatpush.bf16.msra.mxu0 %v389
  %403 = vmatpush.bf16.msra.mxu0 %v388
  %404 = vmatpush.bf16.msra.mxu0 %v387
  %405 = vmatpush.bf16.msra.mxu0 %v386
  %406 = vmatpush.bf16.msra.mxu0 %v385
  %407 = vmatpush.bf16.msra.mxu0 %v384
  %408 = vmatmul.bf16.gmra.mxu0 %v328
  %v409 = vpop.f32.mrf.mxu0
  %v410 = vadd.f32 0.0, %v409
  %v411 = vpop.f32.mrf.mxu0
  %v412 = vadd.f32 0.0, %v411
  %413 = vmatmul.bf16.gmra.mxu0 %v329
  %v414 = vpop.f32.mrf.mxu0
  %v415 = vadd.f32 0.0, %v414
  %v416 = vpop.f32.mrf.mxu0
  %v417 = vadd.f32 0.0, %v416
  %418 = vmatmul.bf16.gmra.mxu0 %v330
  %v419 = vpop.f32.mrf.mxu0
  %v420 = vadd.f32 0.0, %v419
  %v421 = vpop.f32.mrf.mxu0
  %v422 = vadd.f32 0.0, %v421
  %423 = vmatmul.bf16.gmra.mxu0 %v331
  %v424 = vpop.f32.mrf.mxu0
  %v425 = vadd.f32 0.0, %v424
  %v426 = vpop.f32.mrf.mxu0
  %v427 = vadd.f32 0.0, %v426
  %428 = vmatmul.bf16.gmra.mxu0 %v332
  %v429 = vpop.f32.mrf.mxu0
  %v430 = vadd.f32 0.0, %v429
  %v431 = vpop.f32.mrf.mxu0
  %v432 = vadd.f32 0.0, %v431
  %433 = vmatmul.bf16.gmra.mxu0 %v333
  %v434 = vpop.f32.mrf.mxu0
  %v435 = vadd.f32 0.0, %v434
  %v436 = vpop.f32.mrf.mxu0
  %v437 = vadd.f32 0.0, %v436
  %438 = vmatmul.bf16.gmra.mxu0 %v334
  %v439 = vpop.f32.mrf.mxu0
  %v440 = vadd.f32 0.0, %v439
  %v441 = vpop.f32.mrf.mxu0
  %v442 = vadd.f32 0.0, %v441
  %443 = vmatmul.bf16.gmra.mxu0 %v335
  %v444 = vpop.f32.mrf.mxu0
  %v445 = vadd.f32 0.0, %v444
  %v446 = vpop.f32.mrf.mxu0
  %v447 = vadd.f32 0.0, %v446
  %448 = vdwg.mxu0
  %v449 = vrcp.pop %v297
  %v450 = vrcp.pop %v299
  %v451 = vrcp.pop %v301
  %v452 = vrcp.pop %v303
  %v453 = vrcp.pop %v305
  %v454 = vrcp.pop %v307
  %v455 = vrcp.pop %v309
  %v456 = vrcp.pop %v311
  %v457 = vrcp.pop %v313
  %v458 = vrcp.pop %v315
  %v459 = vrcp.pop %v317
  %v460 = vrcp.pop %v319
  %v461 = vrcp.pop %v321
  %v462 = vrcp.pop %v323
  %v463 = vrcp.pop %v325
  %v464 = vrcp.pop %v327
  %v465 = vmul.f32 %v410, %v449
  %v466 = vmul.f32 %v412, %v450
  %v467 = vmul.f32 %v415, %v451
  %v468 = vmul.f32 %v417, %v452
  %v469 = vmul.f32 %v420, %v453
  %v470 = vmul.f32 %v422, %v454
  %v471 = vmul.f32 %v425, %v455
  %v472 = vmul.f32 %v427, %v456
  %v473 = vmul.f32 %v430, %v457
  %v474 = vmul.f32 %v432, %v458
  %v475 = vmul.f32 %v435, %v459
  %v476 = vmul.f32 %v437, %v460
  %v477 = vmul.f32 %v440, %v461
  %v478 = vmul.f32 %v442, %v462
  %v479 = vmul.f32 %v445, %v463
  %v480 = vmul.f32 %v447, %v464
  %v481 = vld [vmem:[%s3] sm:$0x1]
  %v483 = vperm.slane %v481, 0
  %v485 = vadd.f32 %v465, %v483
  %v486 = vadd.f32 %v466, %v483
  %v487 = vadd.f32 %v467, %v483
  %v488 = vadd.f32 %v468, %v483
  %v489 = vadd.f32 %v469, %v483
  %v490 = vadd.f32 %v470, %v483
  %v491 = vadd.f32 %v471, %v483
  %v492 = vadd.f32 %v472, %v483
  %v493 = vadd.f32 %v473, %v483
  %v494 = vadd.f32 %v474, %v483
  %v495 = vadd.f32 %v475, %v483
  %v496 = vadd.f32 %v476, %v483
  %v497 = vadd.f32 %v477, %v483
  %v498 = vadd.f32 %v478, %v483
  %v499 = vadd.f32 %v479, %v483
  %v500 = vadd.f32 %v480, %v483
  %vm501 = vcmp.gt.f32.partialorder %v485, 0.0
  %vm502 = vcmp.gt.f32.partialorder %v486, 0.0
  %vm503 = vcmp.gt.f32.partialorder %v487, 0.0
  %vm504 = vcmp.gt.f32.partialorder %v488, 0.0
  %vm505 = vcmp.gt.f32.partialorder %v489, 0.0
  %vm506 = vcmp.gt.f32.partialorder %v490, 0.0
  %vm507 = vcmp.gt.f32.partialorder %v491, 0.0
  %vm508 = vcmp.gt.f32.partialorder %v492, 0.0
  %vm509 = vcmp.gt.f32.partialorder %v493, 0.0
  %vm510 = vcmp.gt.f32.partialorder %v494, 0.0
  %vm511 = vcmp.gt.f32.partialorder %v495, 0.0
  %vm512 = vcmp.gt.f32.partialorder %v496, 0.0
  %vm513 = vcmp.gt.f32.partialorder %v497, 0.0
  %vm514 = vcmp.gt.f32.partialorder %v498, 0.0
  %vm515 = vcmp.gt.f32.partialorder %v499, 0.0
  %vm516 = vcmp.gt.f32.partialorder %v500, 0.0
  %v517 = vmul.f32 %v485, 1.442695
  %v518 = vpow.pop %v517
  %v519 = vmul.f32 %v486, 1.442695
  %v520 = vpow.pop %v519
  %v521 = vmul.f32 %v487, 1.442695
  %v522 = vpow.pop %v521
  %v523 = vmul.f32 %v488, 1.442695
  %v524 = vpow.pop %v523
  %v525 = vmul.f32 %v489, 1.442695
  %v526 = vpow.pop %v525
  %v527 = vmul.f32 %v490, 1.442695
  %v528 = vpow.pop %v527
  %v529 = vmul.f32 %v491, 1.442695
  %v530 = vpow.pop %v529
  %v531 = vmul.f32 %v492, 1.442695
  %v532 = vpow.pop %v531
  %v533 = vmul.f32 %v493, 1.442695
  %v534 = vpow.pop %v533
  %v535 = vmul.f32 %v494, 1.442695
  %v536 = vpow.pop %v535
  %v537 = vmul.f32 %v495, 1.442695
  %v538 = vpow.pop %v537
  %v539 = vmul.f32 %v496, 1.442695
  %v540 = vpow.pop %v539
  %v541 = vmul.f32 %v497, 1.442695
  %v542 = vpow.pop %v541
  %v543 = vmul.f32 %v498, 1.442695
  %v544 = vpow.pop %v543
  %v545 = vmul.f32 %v499, 1.442695
  %v546 = vpow.pop %v545
  %v547 = vmul.f32 %v500, 1.442695
  %v548 = vpow.pop %v547
  %v549 = vsub.f32 %v518, 1.0
  %v550 = vsub.f32 %v520, 1.0
  %v551 = vsub.f32 %v522, 1.0
  %v552 = vsub.f32 %v524, 1.0
  %v553 = vsub.f32 %v526, 1.0
  %v554 = vsub.f32 %v528, 1.0
  %v555 = vsub.f32 %v530, 1.0
  %v556 = vsub.f32 %v532, 1.0
  %v557 = vsub.f32 %v534, 1.0
  %v558 = vsub.f32 %v536, 1.0
  %v559 = vsub.f32 %v538, 1.0
  %v560 = vsub.f32 %v540, 1.0
  %v561 = vsub.f32 %v542, 1.0
  %v562 = vsub.f32 %v544, 1.0
  %v563 = vsub.f32 %v546, 1.0
  %v564 = vsub.f32 %v548, 1.0
  %v565 = vsel %vm501, %v485, %v549
  %v566 = vsel %vm502, %v486, %v550
  %v567 = vsel %vm503, %v487, %v551
  %v568 = vsel %vm504, %v488, %v552
  %v569 = vsel %vm505, %v489, %v553
  %v570 = vsel %vm506, %v490, %v554
  %v571 = vsel %vm507, %v491, %v555
  %v572 = vsel %vm508, %v492, %v556
  %v573 = vsel %vm509, %v493, %v557
  %v574 = vsel %vm510, %v494, %v558
  %v575 = vsel %vm511, %v495, %v559
  %v576 = vsel %vm512, %v496, %v560
  %v577 = vsel %vm513, %v497, %v561
  %v578 = vsel %vm514, %v498, %v562
  %v579 = vsel %vm515, %v499, %v563
  %v580 = vsel %vm516, %v500, %v564
  %581 = vst [vmem:[%s5] sm:$0xff] %v565
  %582 = vst [vmem:[%s5 + $0x8] sm:$0xff] %v566
  %583 = vst [vmem:[%s5 + $0x10] sm:$0xff] %v567
  %584 = vst [vmem:[%s5 + $0x18] sm:$0xff] %v568
  %585 = vst [vmem:[%s5 + $0x20] sm:$0xff] %v569
  %586 = vst [vmem:[%s5 + $0x28] sm:$0xff] %v570
  %587 = vst [vmem:[%s5 + $0x30] sm:$0xff] %v571
  %588 = vst [vmem:[%s5 + $0x38] sm:$0xff] %v572
  %589 = vst [vmem:[%s5 + $0x40] sm:$0xff] %v573
  %590 = vst [vmem:[%s5 + $0x48] sm:$0xff] %v574
  %591 = vst [vmem:[%s5 + $0x50] sm:$0xff] %v575
  %592 = vst [vmem:[%s5 + $0x58] sm:$0xff] %v576
  %593 = vst [vmem:[%s5 + $0x60] sm:$0xff] %v577
  %594 = vst [vmem:[%s5 + $0x68] sm:$0xff] %v578
  %595 = vst [vmem:[%s5 + $0x70] sm:$0xff] %v579
  %596 = vst [vmem:[%s5 + $0x78] sm:$0xff] %v580
  // Predicated region
  $region22: #{gat_forward.5} parent=0 // pred_check
    _
  $region23: #{gat_forward.5} parent=0 // pred_check_branch
    %598 = sbr.rel (0) target = $region25
  $region24: #{gat_forward.5} parent=0 // pred_region
    _
  $region25: #{gat_forward.5} parent=0 // pred_fallthru
    _
  // Predicated region
  $region26: #{gat_forward.5} parent=0 // pred_check
    _
  $region27: #{gat_forward.5} parent=0 // pred_check_branch
    %600 = sbr.rel (0) target = $region29
  $region28: #{gat_forward.5} parent=0 // pred_region
    _
  $region29: #{gat_forward.5} parent=0 // pred_fallthru
    _

// kernel: gat_forward.7
$region0: #{gat_forward.7}
  #allocation0 [shape = 'u32[]', space=smem, size = 0x4, offset = 0x4, fixed_abs, tag = 'smem constant byte address 0x4 - core index']
  #allocation1 [shape = 'u32[72,128]{1,0:T(1,128)}', space=vmem, size = 0x9000, scoped, tag = 'internal scratch']
  %s0 = inlined_call_operand.vmem [shape: bf16[128,128], index: 0, kind: input, shape index: {}]
  %s1 = inlined_call_operand.vmem [shape: f32[1,128], index: 1, kind: input, shape index: {}]
  %s2 = inlined_call_operand.vmem [shape: f32[128,1], index: 2, kind: input, shape index: {}]
  %s3 = inlined_call_operand.vmem [shape: f32[1,128], index: 3, kind: input, shape index: {}]
  %s4 = inlined_call_operand.vmem [shape: bf16[128,128], index: 4, kind: input, shape index: {}]
  %s5 = inlined_call_operand.vmem [shape: f32[128,128], index: 5, kind: output, shape index: {}]
  %s6 = sld [smem:[#allocation0]]
  $region30: #{gat_forward.7} parent=0
    _
  %s8 = ssub.s32 1, %s6
  %s9 = scalar_select 0, %s8, %s6
  // Predicated region
  $region2: #{gat_forward.7} parent=0 // pred_check
    _
  $region3: #{gat_forward.7} parent=0 // pred_check_branch
    %11 = sbr.rel (0) target = $region5
  $region4: #{gat_forward.7} parent=0 // pred_region
    _
  $region5: #{gat_forward.7} parent=0 // pred_fallthru
    _
  // Predicated region
  $region6: #{gat_forward.7} parent=0 // pred_check
    _
  $region7: #{gat_forward.7} parent=0 // pred_check_branch
    %13 = sbr.rel (0) target = $region9
  $region8: #{gat_forward.7} parent=0 // pred_region
    _
  $region9: #{gat_forward.7} parent=0 // pred_fallthru
    _
  // Predicated region
  $region10: #{gat_forward.7} parent=0 // pred_check
    _
  $region11: #{gat_forward.7} parent=0 // pred_check_branch
    %15 = sbr.rel (0) target = $region13
  $region12: #{gat_forward.7} parent=0 // pred_region
    _
  $region13: #{gat_forward.7} parent=0 // pred_fallthru
    _
  // Predicated region
  $region14: #{gat_forward.7} parent=0 // pred_check
    _
  $region15: #{gat_forward.7} parent=0 // pred_check_branch
    %17 = sbr.rel (0) target = $region17
  $region16: #{gat_forward.7} parent=0 // pred_region
    _
  $region17: #{gat_forward.7} parent=0 // pred_fallthru
    _
  // Predicated region
  $region18: #{gat_forward.7} parent=0 // pred_check
    _
  $region19: #{gat_forward.7} parent=0 // pred_check_branch
    %19 = sbr.rel (0) target = $region21
  $region20: #{gat_forward.7} parent=0 // pred_region
    _
  $region21: #{gat_forward.7} parent=0 // pred_fallthru
    _
  %v20 = vld [vmem:[%s2] sm:$0xff]
  %v21 = vld [vmem:[%s2 + $0x8] sm:$0xff]
  %v22 = vld [vmem:[%s2 + $0x10] sm:$0xff]
  %v23 = vld [vmem:[%s2 + $0x18] sm:$0xff]
  %v24 = vld [vmem:[%s2 + $0x20] sm:$0xff]
  %v25 = vld [vmem:[%s2 + $0x28] sm:$0xff]
  %v26 = vld [vmem:[%s2 + $0x30] sm:$0xff]
  %v27 = vld [vmem:[%s2 + $0x38] sm:$0xff]
  %v28 = vld [vmem:[%s2 + $0x40] sm:$0xff]
  %v29 = vld [vmem:[%s2 + $0x48] sm:$0xff]
  %v30 = vld [vmem:[%s2 + $0x50] sm:$0xff]
  %v31 = vld [vmem:[%s2 + $0x58] sm:$0xff]
  %v32 = vld [vmem:[%s2 + $0x60] sm:$0xff]
  %v33 = vld [vmem:[%s2 + $0x68] sm:$0xff]
  %v34 = vld [vmem:[%s2 + $0x70] sm:$0xff]
  %v35 = vld [vmem:[%s2 + $0x78] sm:$0xff]
  %v36 = vld [vmem:[%s1] sm:$0x1]
  %38 = vset.pattern.permute.xlu0 0
  %39 = vperm.xlu0 %38, %v20
  %v40 = vpop.permute.xlu0 %39
  %43 = vset.pattern.permute.xlu0 0
  %44 = vperm.xlu0 %43, %v21
  %v45 = vpop.permute.xlu0 %44
  %48 = vset.pattern.permute.xlu0 0
  %49 = vperm.xlu0 %48, %v22
  %v50 = vpop.permute.xlu0 %49
  %53 = vset.pattern.permute.xlu0 0
  %54 = vperm.xlu0 %53, %v23
  %v55 = vpop.permute.xlu0 %54
  %58 = vset.pattern.permute.xlu0 0
  %59 = vperm.xlu0 %58, %v24
  %v60 = vpop.permute.xlu0 %59
  %63 = vset.pattern.permute.xlu0 0
  %64 = vperm.xlu0 %63, %v25
  %v65 = vpop.permute.xlu0 %64
  %68 = vset.pattern.permute.xlu0 0
  %69 = vperm.xlu0 %68, %v26
  %v70 = vpop.permute.xlu0 %69
  %73 = vset.pattern.permute.xlu0 0
  %74 = vperm.xlu0 %73, %v27
  %v75 = vpop.permute.xlu0 %74
  %78 = vset.pattern.permute.xlu0 0
  %79 = vperm.xlu0 %78, %v28
  %v80 = vpop.permute.xlu0 %79
  %83 = vset.pattern.permute.xlu0 0
  %84 = vperm.xlu0 %83, %v29
  %v85 = vpop.permute.xlu0 %84
  %88 = vset.pattern.permute.xlu0 0
  %89 = vperm.xlu0 %88, %v30
  %v90 = vpop.permute.xlu0 %89
  %93 = vset.pattern.permute.xlu0 0
  %94 = vperm.xlu0 %93, %v31
  %v95 = vpop.permute.xlu0 %94
  %98 = vset.pattern.permute.xlu0 0
  %99 = vperm.xlu0 %98, %v32
  %v100 = vpop.permute.xlu0 %99
  %103 = vset.pattern.permute.xlu0 0
  %104 = vperm.xlu0 %103, %v33
  %v105 = vpop.permute.xlu0 %104
  %108 = vset.pattern.permute.xlu0 0
  %109 = vperm.xlu0 %108, %v34
  %v110 = vpop.permute.xlu0 %109
  %113 = vset.pattern.permute.xlu0 0
  %114 = vperm.xlu0 %113, %v35
  %v115 = vpop.permute.xlu0 %114
  %v118 = vperm.slane %v36, 0
  %v120 = vadd.f32 %v40, %v118
  %v121 = vadd.f32 %v45, %v118
  %v122 = vadd.f32 %v50, %v118
  %v123 = vadd.f32 %v55, %v118
  %v124 = vadd.f32 %v60, %v118
  %v125 = vadd.f32 %v65, %v118
  %v126 = vadd.f32 %v70, %v118
  %v127 = vadd.f32 %v75, %v118
  %v128 = vadd.f32 %v80, %v118
  %v129 = vadd.f32 %v85, %v118
  %v130 = vadd.f32 %v90, %v118
  %v131 = vadd.f32 %v95, %v118
  %v132 = vadd.f32 %v100, %v118
  %v133 = vadd.f32 %v105, %v118
  %v134 = vadd.f32 %v110, %v118
  %v135 = vadd.f32 %v115, %v118
  %v136 = vmul.f32 %v120, 0.2
  %v137 = vmul.f32 %v121, 0.2
  %v138 = vmul.f32 %v122, 0.2
  %v139 = vmul.f32 %v123, 0.2
  %v140 = vmul.f32 %v124, 0.2
  %v141 = vmul.f32 %v125, 0.2
  %v142 = vmul.f32 %v126, 0.2
  %v143 = vmul.f32 %v127, 0.2
  %v144 = vmul.f32 %v128, 0.2
  %v145 = vmul.f32 %v129, 0.2
  %v146 = vmul.f32 %v130, 0.2
  %v147 = vmul.f32 %v131, 0.2
  %v148 = vmul.f32 %v132, 0.2
  %v149 = vmul.f32 %v133, 0.2
  %v150 = vmul.f32 %v134, 0.2
  %v151 = vmul.f32 %v135, 0.2
  %v152 = vmax.f32 %v120, %v136
  %v153 = vmax.f32 %v121, %v137
  %v154 = vmax.f32 %v122, %v138
  %v155 = vmax.f32 %v123, %v139
  %v156 = vmax.f32 %v124, %v140
  %v157 = vmax.f32 %v125, %v141
  %v158 = vmax.f32 %v126, %v142
  %v159 = vmax.f32 %v127, %v143
  %v160 = vmax.f32 %v128, %v144
  %v161 = vmax.f32 %v129, %v145
  %v162 = vmax.f32 %v130, %v146
  %v163 = vmax.f32 %v131, %v147
  %v164 = vmax.f32 %v132, %v148
  %v165 = vmax.f32 %v133, %v149
  %v166 = vmax.f32 %v134, %v150
  %v167 = vmax.f32 %v135, %v151
  %v168 = vld [vmem:[%s4] sm:$0xf]
  %v169 = vld [vmem:[%s4 + $0x4] sm:$0xf]
  %v170 = vld [vmem:[%s4 + $0x8] sm:$0xf]
  %v171 = vld [vmem:[%s4 + $0xc] sm:$0xf]
  %v172 = vld [vmem:[%s4 + $0x10] sm:$0xf]
  %v173 = vld [vmem:[%s4 + $0x14] sm:$0xf]
  %v174 = vld [vmem:[%s4 + $0x18] sm:$0xf]
  %v175 = vld [vmem:[%s4 + $0x1c] sm:$0xf]
  %v176 = vld [vmem:[%s4 + $0x20] sm:$0xf]
  %v177 = vld [vmem:[%s4 + $0x24] sm:$0xf]
  %v178 = vld [vmem:[%s4 + $0x28] sm:$0xf]
  %v179 = vld [vmem:[%s4 + $0x2c] sm:$0xf]
  %v180 = vld [vmem:[%s4 + $0x30] sm:$0xf]
  %v181 = vld [vmem:[%s4 + $0x34] sm:$0xf]
  %v182 = vld [vmem:[%s4 + $0x38] sm:$0xf]
  %v183 = vld [vmem:[%s4 + $0x3c] sm:$0xf]
  %v184 = vunpack.c.l.bf16 %v168
  %v185 = vunpack.c.l.bf16 %v169
  %v186 = vunpack.c.l.bf16 %v170
  %v187 = vunpack.c.l.bf16 %v171
  %v188 = vunpack.c.l.bf16 %v172
  %v189 = vunpack.c.l.bf16 %v173
  %v190 = vunpack.c.l.bf16 %v174
  %v191 = vunpack.c.l.bf16 %v175
  %v192 = vunpack.c.l.bf16 %v176
  %v193 = vunpack.c.l.bf16 %v177
  %v194 = vunpack.c.l.bf16 %v178
  %v195 = vunpack.c.l.bf16 %v179
  %v196 = vunpack.c.l.bf16 %v180
  %v197 = vunpack.c.l.bf16 %v181
  %v198 = vunpack.c.l.bf16 %v182
  %v199 = vunpack.c.l.bf16 %v183
  %v200 = vadd.f32 %v152, %v184
  %v201 = vadd.f32 %v153, %v185
  %v202 = vadd.f32 %v154, %v186
  %v203 = vadd.f32 %v155, %v187
  %v204 = vadd.f32 %v156, %v188
  %v205 = vadd.f32 %v157, %v189
  %v206 = vadd.f32 %v158, %v190
  %v207 = vadd.f32 %v159, %v191
  %v208 = vadd.f32 %v160, %v192
  %v209 = vadd.f32 %v161, %v193
  %v210 = vadd.f32 %v162, %v194
  %v211 = vadd.f32 %v163, %v195
  %v212 = vadd.f32 %v164, %v196
  %v213 = vadd.f32 %v165, %v197
  %v214 = vadd.f32 %v166, %v198
  %v215 = vadd.f32 %v167, %v199
  %216 = vmax.xlane.f32.xlu0 %v200
  %v217 = vpop.xlane.xlu0 %216
  %218 = vmax.xlane.f32.xlu0 %v201
  %v219 = vpop.xlane.xlu0 %218
  %220 = vmax.xlane.f32.xlu0 %v202
  %v221 = vpop.xlane.xlu0 %220
  %222 = vmax.xlane.f32.xlu0 %v203
  %v223 = vpop.xlane.xlu0 %222
  %224 = vmax.xlane.f32.xlu0 %v204
  %v225 = vpop.xlane.xlu0 %224
  %226 = vmax.xlane.f32.xlu0 %v205
  %v227 = vpop.xlane.xlu0 %226
  %228 = vmax.xlane.f32.xlu0 %v206
  %v229 = vpop.xlane.xlu0 %228
  %230 = vmax.xlane.f32.xlu0 %v207
  %v231 = vpop.xlane.xlu0 %230
  %232 = vmax.xlane.f32.xlu0 %v208
  %v233 = vpop.xlane.xlu0 %232
  %234 = vmax.xlane.f32.xlu0 %v209
  %v235 = vpop.xlane.xlu0 %234
  %236 = vmax.xlane.f32.xlu0 %v210
  %v237 = vpop.xlane.xlu0 %236
  %238 = vmax.xlane.f32.xlu0 %v211
  %v239 = vpop.xlane.xlu0 %238
  %240 = vmax.xlane.f32.xlu0 %v212
  %v241 = vpop.xlane.xlu0 %240
  %242 = vmax.xlane.f32.xlu0 %v213
  %v243 = vpop.xlane.xlu0 %242
  %244 = vmax.xlane.f32.xlu0 %v214
  %v245 = vpop.xlane.xlu0 %244
  %246 = vmax.xlane.f32.xlu0 %v215
  %v247 = vpop.xlane.xlu0 %246
  %v248 = vsub.f32 %v200, %v217
  %v249 = vsub.f32 %v201, %v219
  %v250 = vsub.f32 %v202, %v221
  %v251 = vsub.f32 %v203, %v223
  %v252 = vsub.f32 %v204, %v225
  %v253 = vsub.f32 %v205, %v227
  %v254 = vsub.f32 %v206, %v229
  %v255 = vsub.f32 %v207, %v231
  %v256 = vsub.f32 %v208, %v233
  %v257 = vsub.f32 %v209, %v235
  %v258 = vsub.f32 %v210, %v237
  %v259 = vsub.f32 %v211, %v239
  %v260 = vsub.f32 %v212, %v241
  %v261 = vsub.f32 %v213, %v243
  %v262 = vsub.f32 %v214, %v245
  %v263 = vsub.f32 %v215, %v247
  %v264 = vmul.f32 %v248, 1.442695
  %v265 = vpow.pop %v264
  %v266 = vmul.f32 %v249, 1.442695
  %v267 = vpow.pop %v266
  %v268 = vmul.f32 %v250, 1.442695
  %v269 = vpow.pop %v268
  %v270 = vmul.f32 %v251, 1.442695
  %v271 = vpow.pop %v270
  %v272 = vmul.f32 %v252, 1.442695
  %v273 = vpow.pop %v272
  %v274 = vmul.f32 %v253, 1.442695
  %v275 = vpow.pop %v274
  %v276 = vmul.f32 %v254, 1.442695
  %v277 = vpow.pop %v276
  %v278 = vmul.f32 %v255, 1.442695
  %v279 = vpow.pop %v278
  %v280 = vmul.f32 %v256, 1.442695
  %v281 = vpow.pop %v280
  %v282 = vmul.f32 %v257, 1.442695
  %v283 = vpow.pop %v282
  %v284 = vmul.f32 %v258, 1.442695
  %v285 = vpow.pop %v284
  %v286 = vmul.f32 %v259, 1.442695
  %v287 = vpow.pop %v286
  %v288 = vmul.f32 %v260, 1.442695
  %v289 = vpow.pop %v288
  %v290 = vmul.f32 %v261, 1.442695
  %v291 = vpow.pop %v290
  %v292 = vmul.f32 %v262, 1.442695
  %v293 = vpow.pop %v292
  %v294 = vmul.f32 %v263, 1.442695
  %v295 = vpow.pop %v294
  %296 = vadd.xlane.f32.xlu0 %v265
  %v297 = vpop.xlane.xlu0 %296
  %298 = vadd.xlane.f32.xlu0 %v267
  %v299 = vpop.xlane.xlu0 %298
  %300 = vadd.xlane.f32.xlu0 %v269
  %v301 = vpop.xlane.xlu0 %300
  %302 = vadd.xlane.f32.xlu0 %v271
  %v303 = vpop.xlane.xlu0 %302
  %304 = vadd.xlane.f32.xlu0 %v273
  %v305 = vpop.xlane.xlu0 %304
  %306 = vadd.xlane.f32.xlu0 %v275
  %v307 = vpop.xlane.xlu0 %306
  %308 = vadd.xlane.f32.xlu0 %v277
  %v309 = vpop.xlane.xlu0 %308
  %310 = vadd.xlane.f32.xlu0 %v279
  %v311 = vpop.xlane.xlu0 %310
  %312 = vadd.xlane.f32.xlu0 %v281
  %v313 = vpop.xlane.xlu0 %312
  %314 = vadd.xlane.f32.xlu0 %v283
  %v315 = vpop.xlane.xlu0 %314
  %316 = vadd.xlane.f32.xlu0 %v285
  %v317 = vpop.xlane.xlu0 %316
  %318 = vadd.xlane.f32.xlu0 %v287
  %v319 = vpop.xlane.xlu0 %318
  %320 = vadd.xlane.f32.xlu0 %v289
  %v321 = vpop.xlane.xlu0 %320
  %322 = vadd.xlane.f32.xlu0 %v291
  %v323 = vpop.xlane.xlu0 %322
  %324 = vadd.xlane.f32.xlu0 %v293
  %v325 = vpop.xlane.xlu0 %324
  %326 = vadd.xlane.f32.xlu0 %v295
  %v327 = vpop.xlane.xlu0 %326
  %v328 = vpack.c.bf16 %v267, %v265
  %v329 = vpack.c.bf16 %v271, %v269
  %v330 = vpack.c.bf16 %v275, %v273
  %v331 = vpack.c.bf16 %v279, %v277
  %v332 = vpack.c.bf16 %v283, %v281
  %v333 = vpack.c.bf16 %v287, %v285
  %v334 = vpack.c.bf16 %v291, %v289
  %v335 = vpack.c.bf16 %v295, %v293
  %v336 = vld [vmem:[%s0] sm:$0xf]
  %v337 = vld [vmem:[%s0 + $0x4] sm:$0xf]
  %v338 = vld [vmem:[%s0 + $0x8] sm:$0xf]
  %v339 = vld [vmem:[%s0 + $0xc] sm:$0xf]
  %v340 = vld [vmem:[%s0 + $0x10] sm:$0xf]
  %v341 = vld [vmem:[%s0 + $0x14] sm:$0xf]
  %v342 = vld [vmem:[%s0 + $0x18] sm:$0xf]
  %v343 = vld [vmem:[%s0 + $0x1c] sm:$0xf]
  %v344 = vld [vmem:[%s0 + $0x20] sm:$0xf]
  %v345 = vld [vmem:[%s0 + $0x24] sm:$0xf]
  %v346 = vld [vmem:[%s0 + $0x28] sm:$0xf]
  %v347 = vld [vmem:[%s0 + $0x2c] sm:$0xf]
  %v348 = vld [vmem:[%s0 + $0x30] sm:$0xf]
  %v349 = vld [vmem:[%s0 + $0x34] sm:$0xf]
  %v350 = vld [vmem:[%s0 + $0x38] sm:$0xf]
  %v351 = vld [vmem:[%s0 + $0x3c] sm:$0xf]
  %v368 = vunpack.c.l.b16 %v336
  %v369 = vunpack.c.l.b16 %v337
  %v370 = vunpack.c.l.b16 %v338
  %v371 = vunpack.c.l.b16 %v339
  %v372 = vunpack.c.l.b16 %v340
  %v373 = vunpack.c.l.b16 %v341
  %v374 = vunpack.c.l.b16 %v342
  %v375 = vunpack.c.l.b16 %v343
  %v376 = vunpack.c.l.b16 %v344
  %v377 = vunpack.c.l.b16 %v345
  %v378 = vunpack.c.l.b16 %v346
  %v379 = vunpack.c.l.b16 %v347
  %v380 = vunpack.c.l.b16 %v348
  %v381 = vunpack.c.l.b16 %v349
  %v382 = vunpack.c.l.b16 %v350
  %v383 = vunpack.c.l.b16 %v351
  %v384 = vpack.c.b16 %v369, %v368
  %v385 = vpack.c.b16 %v371, %v370
  %v386 = vpack.c.b16 %v373, %v372
  %v387 = vpack.c.b16 %v375, %v374
  %v388 = vpack.c.b16 %v377, %v376
  %v389 = vpack.c.b16 %v379, %v378
  %v390 = vpack.c.b16 %v381, %v380
  %v391 = vpack.c.b16 %v383, %v382
  %400 = vmatpush.bf16.msra.mxu0 %v391
  %401 = vmatpush.bf16.msra.mxu0 %v390
  %402 = vmatpush.bf16.msra.mxu0 %v389
  %403 = vmatpush.bf16.msra.mxu0 %v388
  %404 = vmatpush.bf16.msra.mxu0 %v387
  %405 = vmatpush.bf16.msra.mxu0 %v386
  %406 = vmatpush.bf16.msra.mxu0 %v385
  %407 = vmatpush.bf16.msra.mxu0 %v384
  %408 = vmatmul.bf16.gmra.mxu0 %v328
  %v409 = vpop.f32.mrf.mxu0
  %v410 = vadd.f32 0.0, %v409
  %v411 = vpop.f32.mrf.mxu0
  %v412 = vadd.f32 0.0, %v411
  %413 = vmatmul.bf16.gmra.mxu0 %v329
  %v414 = vpop.f32.mrf.mxu0
  %v415 = vadd.f32 0.0, %v414
  %v416 = vpop.f32.mrf.mxu0
  %v417 = vadd.f32 0.0, %v416
  %418 = vmatmul.bf16.gmra.mxu0 %v330
  %v419 = vpop.f32.mrf.mxu0
  %v420 = vadd.f32 0.0, %v419
  %v421 = vpop.f32.mrf.mxu0
  %v422 = vadd.f32 0.0, %v421
  %423 = vmatmul.bf16.gmra.mxu0 %v331
  %v424 = vpop.f32.mrf.mxu0
  %v425 = vadd.f32 0.0, %v424
  %v426 = vpop.f32.mrf.mxu0
  %v427 = vadd.f32 0.0, %v426
  %428 = vmatmul.bf16.gmra.mxu0 %v332
  %v429 = vpop.f32.mrf.mxu0
  %v430 = vadd.f32 0.0, %v429
  %v431 = vpop.f32.mrf.mxu0
  %v432 = vadd.f32 0.0, %v431
  %433 = vmatmul.bf16.gmra.mxu0 %v333
  %v434 = vpop.f32.mrf.mxu0
  %v435 = vadd.f32 0.0, %v434
  %v436 = vpop.f32.mrf.mxu0
  %v437 = vadd.f32 0.0, %v436
  %438 = vmatmul.bf16.gmra.mxu0 %v334
  %v439 = vpop.f32.mrf.mxu0
  %v440 = vadd.f32 0.0, %v439
  %v441 = vpop.f32.mrf.mxu0
  %v442 = vadd.f32 0.0, %v441
  %443 = vmatmul.bf16.gmra.mxu0 %v335
  %v444 = vpop.f32.mrf.mxu0
  %v445 = vadd.f32 0.0, %v444
  %v446 = vpop.f32.mrf.mxu0
  %v447 = vadd.f32 0.0, %v446
  %448 = vdwg.mxu0
  %v449 = vrcp.pop %v297
  %v450 = vrcp.pop %v299
  %v451 = vrcp.pop %v301
  %v452 = vrcp.pop %v303
  %v453 = vrcp.pop %v305
  %v454 = vrcp.pop %v307
  %v455 = vrcp.pop %v309
  %v456 = vrcp.pop %v311
  %v457 = vrcp.pop %v313
  %v458 = vrcp.pop %v315
  %v459 = vrcp.pop %v317
  %v460 = vrcp.pop %v319
  %v461 = vrcp.pop %v321
  %v462 = vrcp.pop %v323
  %v463 = vrcp.pop %v325
  %v464 = vrcp.pop %v327
  %v465 = vmul.f32 %v410, %v449
  %v466 = vmul.f32 %v412, %v450
  %v467 = vmul.f32 %v415, %v451
  %v468 = vmul.f32 %v417, %v452
  %v469 = vmul.f32 %v420, %v453
  %v470 = vmul.f32 %v422, %v454
  %v471 = vmul.f32 %v425, %v455
  %v472 = vmul.f32 %v427, %v456
  %v473 = vmul.f32 %v430, %v457
  %v474 = vmul.f32 %v432, %v458
  %v475 = vmul.f32 %v435, %v459
  %v476 = vmul.f32 %v437, %v460
  %v477 = vmul.f32 %v440, %v461
  %v478 = vmul.f32 %v442, %v462
  %v479 = vmul.f32 %v445, %v463
  %v480 = vmul.f32 %v447, %v464
  %v481 = vld [vmem:[%s3] sm:$0x1]
  %v483 = vperm.slane %v481, 0
  %v485 = vadd.f32 %v465, %v483
  %v486 = vadd.f32 %v466, %v483
  %v487 = vadd.f32 %v467, %v483
  %v488 = vadd.f32 %v468, %v483
  %v489 = vadd.f32 %v469, %v483
  %v490 = vadd.f32 %v470, %v483
  %v491 = vadd.f32 %v471, %v483
  %v492 = vadd.f32 %v472, %v483
  %v493 = vadd.f32 %v473, %v483
  %v494 = vadd.f32 %v474, %v483
  %v495 = vadd.f32 %v475, %v483
  %v496 = vadd.f32 %v476, %v483
  %v497 = vadd.f32 %v477, %v483
  %v498 = vadd.f32 %v478, %v483
  %v499 = vadd.f32 %v479, %v483
  %v500 = vadd.f32 %v480, %v483
  %501 = vst [vmem:[%s5] sm:$0xff] %v485
  %502 = vst [vmem:[%s5 + $0x8] sm:$0xff] %v486
  %503 = vst [vmem:[%s5 + $0x10] sm:$0xff] %v487
  %504 = vst [vmem:[%s5 + $0x18] sm:$0xff] %v488
  %505 = vst [vmem:[%s5 + $0x20] sm:$0xff] %v489
  %506 = vst [vmem:[%s5 + $0x28] sm:$0xff] %v490
  %507 = vst [vmem:[%s5 + $0x30] sm:$0xff] %v491
  %508 = vst [vmem:[%s5 + $0x38] sm:$0xff] %v492
  %509 = vst [vmem:[%s5 + $0x40] sm:$0xff] %v493
  %510 = vst [vmem:[%s5 + $0x48] sm:$0xff] %v494
  %511 = vst [vmem:[%s5 + $0x50] sm:$0xff] %v495
  %512 = vst [vmem:[%s5 + $0x58] sm:$0xff] %v496
  %513 = vst [vmem:[%s5 + $0x60] sm:$0xff] %v497
  %514 = vst [vmem:[%s5 + $0x68] sm:$0xff] %v498
  %515 = vst [vmem:[%s5 + $0x70] sm:$0xff] %v499
  %516 = vst [vmem:[%s5 + $0x78] sm:$0xff] %v500
  // Predicated region
  $region22: #{gat_forward.7} parent=0 // pred_check
    _
  $region23: #{gat_forward.7} parent=0 // pred_check_branch
    %518 = sbr.rel (0) target = $region25
  $region24: #{gat_forward.7} parent=0 // pred_region
    _
  $region25: #{gat_forward.7} parent=0 // pred_fallthru
    _
  // Predicated region
  $region26: #{gat_forward.7} parent=0 // pred_check
    _
  $region27: #{gat_forward.7} parent=0 // pred_check_branch
    %520 = sbr.rel (0) target = $region29
  $region28: #{gat_forward.7} parent=0 // pred_region
    _
  $region29: #{gat_forward.7} parent=0 // pred_fallthru
    _

</llo_original>
